<compile_context>
chip_gen: v7x
topology: tpu7x:2x2x1
jax: 0.10.0
libtpu: 0.0.40
codegen_flags: <defaults>
</compile_context>

<pallas_src>
import jax
import jax.numpy as jnp
import numpy as np
from jax.experimental import pallas as pl
from jax.experimental.pallas import tpu as pltpu


def _round_up(x, m):
    return ((x + m - 1) // m) * m


def _pad_axis(x, axis, new_size):
    if x.shape[axis] == new_size:
        return x
    pad = [(0, 0)] * x.ndim
    pad[axis] = (0, new_size - x.shape[axis])
    return jnp.pad(x, pad)


def _pick_tile(n, candidates):
    for c in candidates:
        if n % c == 0:
            return c
    return n


# ---------------------------------------------------------------------------
# Kernel 1: sequential LSTM recurrence (h/c carried in VMEM scratch).
# Grid = (batch_blocks [parallel], time_blocks [arbitrary]).
# ---------------------------------------------------------------------------
def lstm_recurrence_kernel(gx_ref, whh_hbm, h_seq_ref,
                           h_scr, c_scr, whh_vmem, dma_sem):
    """gx_ref : (TS, BB, 4*Hp) bf16  precomputed x @ W_ih + bias
       whh_hbm: (Hp, 4*Hp)     bf16  recurrent weights (ANY / HBM)
       h_seq  : (TS, BB, Hp)   bf16  per-step hidden states (output block)."""
    Hp = h_scr.shape[-1]
    TS = gx_ref.shape[0]

    @pl.when(pl.program_id(1) == 0)
    def _():
        # init_hidden(): stage W_hh once per batch block; overlap the DMA with
        # zeroing h/c, wait only right before the first matmul needs it.
        cp = pltpu.make_async_copy(whh_hbm, whh_vmem, dma_sem)
        cp.start()
        h_scr[...] = jnp.zeros_like(h_scr)
        c_scr[...] = jnp.zeros_like(c_scr)
        cp.wait()

    def step(t, carry):
        h = h_scr[...]                                   # (BB, Hp) bf16
        c = c_scr[...]                                   # (BB, Hp) f32
        # TODO(synk): for small batch this h@W_hh is weight-streaming bound;
        # int8 (v5e/v6e) / fp8 (v7x) W_hh would roughly halve the per-step cost.
        gates = gx_ref[t].astype(jnp.float32) + jnp.dot(
            h, whh_vmem[...], preferred_element_type=jnp.float32)
        # PyTorch LSTM gate order: input, forget, cell(g), output.
        # Hp is lane-aligned -> every slice is a pure VPU/EUP op.
        i_g = jax.nn.sigmoid(gates[:, 0 * Hp:1 * Hp])
        f_g = jax.nn.sigmoid(gates[:, 1 * Hp:2 * Hp])
        g_g = jnp.tanh(gates[:, 2 * Hp:3 * Hp])
        o_g = jax.nn.sigmoid(gates[:, 3 * Hp:4 * Hp])
        c_new = f_g * c + i_g * g_g
        h_new = (o_g * jnp.tanh(c_new)).astype(jnp.bfloat16)   # cast once
        c_scr[...] = c_new
        h_scr[...] = h_new            # bf16 carry: matmul input is bf16 anyway
        h_seq_ref[t] = h_new
        return carry

    jax.lax.fori_loop(0, TS, step, 0, unroll=True)


# ---------------------------------------------------------------------------
# Kernel 2: vocab projection over the whole (padded) sequence, tiled M x V.
# ---------------------------------------------------------------------------
def output_proj_kernel(h_ref, w_ref, b_ref, o_ref):
    o_ref[...] = (jnp.dot(h_ref[...], w_ref[...],
                          preferred_element_type=jnp.float32) + b_ref[...])


def decoder_rnn_forward(features, captions, params, *, steps_per_block=8):
    """features: (B, E) f32, captions: (B, T) i32 -> (B, T, V) f32."""
    B, E = features.shape
    T = captions.shape[1]
    H = params["w_hh"].shape[0]
    V = params["w_out"].shape[1]

    TS = steps_per_block
    # Batch blocking: >= 2 batch blocks when B > 8 so the 'parallel' batch grid
    # axis can be sharded across the 2 TensorCores on v7x (harmless elsewhere).
    if B <= 8:
        Bp, BB = _round_up(B, 8), _round_up(B, 8)
    else:
        Bp = _round_up(B, 16)
        BB = Bp // 2
    NB = Bp // BB
    lane_mult = 256 if H > 128 else 128      # 256 = full v6e/v7x MXU tile
    Hp = _round_up(H, lane_mult)
    Vp = _round_up(V, 256) if V > 128 else _round_up(V, 128)
    Tp = _round_up(T, TS)

    f32, bf16 = jnp.float32, jnp.bfloat16

    # ---- step inputs, time-major; step 0 = features, step t>0 = emb(captions[:, t])
    emb_bf = params["embedding"].astype(bf16)
    feat = features.astype(bf16)[:, None, :]                      # (B, 1, E)
    if T > 1:
        # captions[:, 0] is never consumed by the PyTorch loop -> skip its gather.
        x_btE = jnp.concatenate([feat, emb_bf[captions[:, 1:]]], axis=1)
    else:
        x_btE = feat
    x_seq = jnp.transpose(x_btE, (1, 0, 2))                       # (T, B, E) bf16

    # ---- hoisted input projection: one big MXU matmul (bf16 in, f32 acc)
    wih = params["w_ih"].astype(bf16)                             # (E, 4H)
    gx = jnp.einsum("tbe,eg->tbg", x_seq, wih,
                    preferred_element_type=f32) + params["b"]     # (T, B, 4H) f32

    # pad per-gate so each gate occupies a lane-aligned Hp block (inert padding),
    # then cast to bf16 to halve the serial kernel's HBM->VMEM traffic.
    gx = gx.reshape(T, B, 4, H)
    gx = _pad_axis(_pad_axis(_pad_axis(gx, 0, Tp), 1, Bp), 3, Hp)
    gx = gx.reshape(Tp, Bp, 4 * Hp).astype(bf16)

    whh = params["w_hh"].reshape(H, 4, H)
    whh = _pad_axis(_pad_axis(whh, 0, Hp), 2, Hp)
    whh = whh.reshape(Hp, 4 * Hp).astype(bf16)

    # ---- sequential recurrence: TS timesteps per grid iteration
    h_seq = pl.pallas_call(
        lstm_recurrence_kernel,
        out_shape=jax.ShapeDtypeStruct((Tp, Bp, Hp), bf16),
        grid_spec=pltpu.PrefetchScalarGridSpec(
            num_scalar_prefetch=0,
            grid=(NB, Tp // TS),
            in_specs=[
                pl.BlockSpec((TS, BB, 4 * Hp), lambda b, t: (t, b, 0)),
                pl.BlockSpec(memory_space=pl.ANY),   # W_hh: manual one-time copy
            ],
            out_specs=pl.BlockSpec((TS, BB, Hp), lambda b, t: (t, b, 0)),
            scratch_shapes=[
                pltpu.VMEM((BB, Hp), bf16),           # h carry (bf16)
                pltpu.VMEM((BB, Hp), f32),            # c carry (f32)
                pltpu.VMEM((Hp, 4 * Hp), bf16),       # W_hh (single buffer)
                pltpu.SemaphoreType.DMA(()),
            ],
        ),
        compiler_params=pltpu.CompilerParams(
            dimension_semantics=("parallel", "arbitrary"),
            vmem_limit_bytes=48 * 1024 * 1024),       # headroom on v7x (64 MiB)
    )(gx, whh)

    # ---- vocab projection: parallel matmul tiled over M (=Tp*Bp) and V
    wout = _pad_axis(_pad_axis(params["w_out"], 0, Hp), 1, Vp).astype(bf16)
    bout = _pad_axis(params["b_out"], 1, Vp).astype(f32)
    M = Tp * Bp
    h_flat = h_seq.reshape(M, Hp)
    tn = _pick_tile(Vp, (512, 256, 128))
    tm = _pick_tile(M, (512, 256, 128, 64))
    # TODO(synk): int8 (v5e/v6e) / fp8 (v7x) W_out would ~2x MXU throughput here.

    logits = pl.pallas_call(
        output_proj_kernel,
        out_shape=jax.ShapeDtypeStruct((M, Vp), f32),
        grid_spec=pltpu.PrefetchScalarGridSpec(
            num_scalar_prefetch=0,
            grid=(M // tm, Vp // tn),
            in_specs=[
                pl.BlockSpec((tm, Hp), lambda i, j: (i, 0)),
                pl.BlockSpec((Hp, tn), lambda i, j: (0, j)),
                pl.BlockSpec((1, tn), lambda i, j: (0, j)),
            ],
            out_specs=pl.BlockSpec((tm, tn), lambda i, j: (i, j)),
        ),
        compiler_params=pltpu.CompilerParams(
            dimension_semantics=("parallel", "parallel"),
            vmem_limit_bytes=48 * 1024 * 1024),
    )(h_flat, wout, bout)

    logits = logits.reshape(Tp, Bp, Vp)[:T, :B, :V]
    return jnp.transpose(logits, (1, 0, 2))              # (B, T, V)


def decoder_rnn_reference(features, captions, params):
    """Pure-JAX f32 reference mirroring the PyTorch forward loop."""
    B, _ = features.shape
    T = captions.shape[1]
    H = params["w_hh"].shape[0]
    emb = params["embedding"]
    h = jnp.zeros((B, H), jnp.float32)
    c = jnp.zeros((B, H), jnp.float32)
    outs = []
    for i in range(T):
        x = features if i == 0 else emb[captions[:, i]]
        gates = x @ params["w_ih"] + h @ params["w_hh"] + params["b"]
        i_g = jax.nn.sigmoid(gates[:, 0 * H:1 * H])
        f_g = jax.nn.sigmoid(gates[:, 1 * H:2 * H])
        g_g = jnp.tanh(gates[:, 2 * H:3 * H])
        o_g = jax.nn.sigmoid(gates[:, 3 * H:4 * H])
        c = f_g * c + i_g * g_g
        h = o_g * jnp.tanh(c)
        outs.append(h @ params["w_out"] + params["b_out"])
    return jnp.stack(outs, axis=1)                       # (B, T, V)


def init_params(key, vocab_size, embed_size, hidden_size):
    ks = jax.random.split(key, 6)
    scale = 0.1
    return {
        "embedding": scale * jax.random.normal(ks[0], (vocab_size, embed_size), jnp.float32),
        "w_ih": scale * jax.random.normal(ks[1], (embed_size, 4 * hidden_size), jnp.float32),
        "w_hh": scale * jax.random.normal(ks[2], (hidden_size, 4 * hidden_size), jnp.float32),
        # combined bias = b_ih + b_hh, kept 2D for TPU-friendly layout
        "b": scale * jax.random.normal(ks[3], (1, 4 * hidden_size), jnp.float32),
        "w_out": scale * jax.random.normal(ks[4], (hidden_size, vocab_size), jnp.float32),
        "b_out": scale * jax.random.normal(ks[5], (1, vocab_size), jnp.float32),
    }


if __name__ == "__main__":
    B, T = 2, 8
    EMBED, HIDDEN, VOCAB = 32, 32, 128

    key = jax.random.PRNGKey(0)
    k_feat, k_cap, k_par = jax.random.split(key, 3)

    features = jax.random.normal(k_feat, (B, EMBED), jnp.float32)
    captions = jax.random.randint(k_cap, (B, T), 0, VOCAB, dtype=jnp.int32)
    params = init_params(k_par, VOCAB, EMBED, HIDDEN)

    out = jax.block_until_ready(decoder_rnn_forward(features, captions, params))
    assert out.shape == (B, T, VOCAB) and out.dtype == jnp.float32

    # Loose-tolerance check vs. pure-JAX f32 reference (kernel uses bf16 matmuls
    # and a bf16 gx / h carry).
    ref = jax.block_until_ready(decoder_rnn_reference(features, captions, params))
    np.testing.assert_allclose(np.asarray(out), np.asarray(ref), atol=3e-2, rtol=3e-2)
    print("KERNEL_OK")
</pallas_src>

<mosaic_0001>
module attributes {stable_mosaic.version = 11 : i64} {
  func.func @lstm_recurrence_kernel(%arg0: i32, %arg1: i32, %arg2: memref<8x8x512xbf16, #tpu.memory_space<vmem>>, %arg3: memref<128x512xbf16, #tpu.memory_space<any>>, %arg4: memref<8x8x128xbf16, #tpu.memory_space<vmem>>, %arg5: memref<8x128xbf16, #tpu.memory_space<vmem>>, %arg6: memref<8x128xf32, #tpu.memory_space<vmem>>, %arg7: memref<128x512xbf16, #tpu.memory_space<vmem>>, %arg8: memref<!tpu.dma_semaphore, #tpu.memory_space<semaphore_mem>>) attributes {dimension_semantics = [#tpu.dimension_semantics<parallel>, #tpu.dimension_semantics<arbitrary>], iteration_bounds = array<i64: 1, 1>, scalar_prefetch = 0 : i64, scratch_operands = 4 : i64, tpu.core_type = #tpu.core_type<tc>, window_params = [{transform_indices = @transform_0, window_bounds = array<i64: 8, 8, 512>}, {}, {transform_indices = @transform_2, window_bounds = array<i64: 8, 8, 128>}]} {
    %c0_i32 = arith.constant 0 : i32
    %0 = arith.cmpi eq, %arg1, %c0_i32 : i32
    %1 = arith.extui %0 : i1 to i32
    %c0_i32_0 = arith.constant 0 : i32
    %2 = arith.cmpi ne, %1, %c0_i32_0 : i32
    scf.if %2 {
      tpu.enqueue_dma source(%arg3 : memref<128x512xbf16, #tpu.memory_space<any>>) target(%arg7 : memref<128x512xbf16, #tpu.memory_space<vmem>>) target_semaphore(%arg8 : memref<!tpu.dma_semaphore, #tpu.memory_space<semaphore_mem>>)
      %cst_144 = arith.constant 0.000000e+00 : bf16
      %331 = vector.broadcast %cst_144 : bf16 to vector<8x128xbf16>
      %c0_145 = arith.constant 0 : index
      %c0_146 = arith.constant 0 : index
      %332 = vector.load %arg5[%c0_145, %c0_146] : memref<8x128xbf16, #tpu.memory_space<vmem>>, vector<8x128xbf16>
      tpu.vector_store %arg5[%c0_145, %c0_146], %331 {strides = array<i32>} : memref<8x128xbf16, #tpu.memory_space<vmem>>, vector<8x128xbf16>,
      %cst_147 = arith.constant 0.000000e+00 : f32
      %333 = vector.broadcast %cst_147 : f32 to vector<8x128xf32>
      %c0_148 = arith.constant 0 : index
      %c0_149 = arith.constant 0 : index
      %334 = vector.load %arg6[%c0_148, %c0_149] : memref<8x128xf32, #tpu.memory_space<vmem>>, vector<8x128xf32>
      tpu.vector_store %arg6[%c0_148, %c0_149], %333 {strides = array<i32>} : memref<8x128xf32, #tpu.memory_space<vmem>>, vector<8x128xf32>,
      tpu.wait_dma2 semaphore(%arg8 : memref<!tpu.dma_semaphore, #tpu.memory_space<semaphore_mem>>) src(%arg3 : memref<128x512xbf16, #tpu.memory_space<any>>) dst(%arg7 : memref<128x512xbf16, #tpu.memory_space<vmem>>)
    } else {
    }
    %c0_i32_1 = arith.constant 0 : i32
    %c0 = arith.constant 0 : index
    %c0_2 = arith.constant 0 : index
    %3 = vector.load %arg5[%c0, %c0_2] : memref<8x128xbf16, #tpu.memory_space<vmem>>, vector<8x128xbf16>
    %c0_3 = arith.constant 0 : index
    %c0_4 = arith.constant 0 : index
    %4 = vector.load %arg6[%c0_3, %c0_4] : memref<8x128xf32, #tpu.memory_space<vmem>>, vector<8x128xf32>
    %5 = arith.index_cast %c0_i32_1 : i32 to index
    %c0_5 = arith.constant 0 : index
    %c0_6 = arith.constant 0 : index
    %6 = vector.load %arg2[%5, %c0_5, %c0_6] : memref<8x8x512xbf16, #tpu.memory_space<vmem>>, vector<1x8x512xbf16>
    %7 = vector.shape_cast %6 : vector<1x8x512xbf16> to vector<8x512xbf16>
    %8 = arith.extf %7 : vector<8x512xbf16> to vector<8x512xf32>
    %c0_7 = arith.constant 0 : index
    %c0_8 = arith.constant 0 : index
    %9 = vector.load %arg7[%c0_7, %c0_8] : memref<128x512xbf16, #tpu.memory_space<vmem>>, vector<128x512xbf16>
    %cst = arith.constant dense<0.000000e+00> : vector<8x512xf32>
    %10 = tpu.matmul %3, %9, %cst {dimension_numbers = #tpu.dot_dimension_numbers<[1], [0], [0], [1], [0, 0, 1, 1], [], []>} : vector<8x128xbf16>, vector<128x512xbf16>, vector<8x512xf32> -> vector<8x512xf32>
    %11 = arith.addf %8, %10 : vector<8x512xf32>
    %12 = vector.extract_strided_slice %11 {offsets = [0, 0], sizes = [8, 128], strides = [1, 1]} : vector<8x512xf32> to vector<8x128xf32>
    %13 = arith.negf %12 : vector<8x128xf32>
    %14 = math.exp %13 : vector<8x128xf32>
    %cst_9 = arith.constant 1.000000e+00 : f32
    %15 = vector.broadcast %cst_9 : f32 to vector<8x128xf32>
    %16 = arith.addf %15, %14 : vector<8x128xf32>
    %17 = arith.divf %15, %16 : vector<8x128xf32>
    %18 = vector.extract_strided_slice %11 {offsets = [0, 128], sizes = [8, 128], strides = [1, 1]} : vector<8x512xf32> to vector<8x128xf32>
    %19 = arith.negf %18 : vector<8x128xf32>
    %20 = math.exp %19 : vector<8x128xf32>
    %cst_10 = arith.constant 1.000000e+00 : f32
    %21 = vector.broadcast %cst_10 : f32 to vector<8x128xf32>
    %22 = arith.addf %21, %20 : vector<8x128xf32>
    %23 = arith.divf %21, %22 : vector<8x128xf32>
    %24 = vector.extract_strided_slice %11 {offsets = [0, 256], sizes = [8, 128], strides = [1, 1]} : vector<8x512xf32> to vector<8x128xf32>
    %25 = math.tanh %24 : vector<8x128xf32>
    %26 = vector.extract_strided_slice %11 {offsets = [0, 384], sizes = [8, 128], strides = [1, 1]} : vector<8x512xf32> to vector<8x128xf32>
    %27 = arith.negf %26 : vector<8x128xf32>
    %28 = math.exp %27 : vector<8x128xf32>
    %cst_11 = arith.constant 1.000000e+00 : f32
    %29 = vector.broadcast %cst_11 : f32 to vector<8x128xf32>
    %30 = arith.addf %29, %28 : vector<8x128xf32>
    %31 = arith.divf %29, %30 : vector<8x128xf32>
    %32 = arith.mulf %23, %4 : vector<8x128xf32>
    %33 = arith.mulf %17, %25 : vector<8x128xf32>
    %34 = arith.addf %32, %33 : vector<8x128xf32>
    %35 = math.tanh %34 : vector<8x128xf32>
    %36 = arith.mulf %31, %35 : vector<8x128xf32>
    %37 = arith.truncf %36 : vector<8x128xf32> to vector<8x128xbf16>
    %c0_12 = arith.constant 0 : index
    %c0_13 = arith.constant 0 : index
    %38 = vector.load %arg6[%c0_12, %c0_13] : memref<8x128xf32, #tpu.memory_space<vmem>>, vector<8x128xf32>
    tpu.vector_store %arg6[%c0_12, %c0_13], %34 {strides = array<i32>} : memref<8x128xf32, #tpu.memory_space<vmem>>, vector<8x128xf32>,
    %c0_14 = arith.constant 0 : index
    %c0_15 = arith.constant 0 : index
    %39 = vector.load %arg5[%c0_14, %c0_15] : memref<8x128xbf16, #tpu.memory_space<vmem>>, vector<8x128xbf16>
    tpu.vector_store %arg5[%c0_14, %c0_15], %37 {strides = array<i32>} : memref<8x128xbf16, #tpu.memory_space<vmem>>, vector<8x128xbf16>,
    %40 = arith.index_cast %c0_i32_1 : i32 to index
    %c0_16 = arith.constant 0 : index
    %c0_17 = arith.constant 0 : index
    %41 = vector.load %arg4[%40, %c0_16, %c0_17] : memref<8x8x128xbf16, #tpu.memory_space<vmem>>, vector<1x8x128xbf16>
    %42 = vector.shape_cast %41 : vector<1x8x128xbf16> to vector<8x128xbf16>
    %43 = vector.shape_cast %37 : vector<8x128xbf16> to vector<1x8x128xbf16>
    tpu.vector_store %arg4[%40, %c0_16, %c0_17], %43 {strides = array<i32>} : memref<8x8x128xbf16, #tpu.memory_space<vmem>>, vector<1x8x128xbf16>,
    %c1_i32 = arith.constant 1 : i32
    %c0_18 = arith.constant 0 : index
    %c0_19 = arith.constant 0 : index
    %44 = vector.load %arg5[%c0_18, %c0_19] : memref<8x128xbf16, #tpu.memory_space<vmem>>, vector<8x128xbf16>
    %c0_20 = arith.constant 0 : index
    %c0_21 = arith.constant 0 : index
    %45 = vector.load %arg6[%c0_20, %c0_21] : memref<8x128xf32, #tpu.memory_space<vmem>>, vector<8x128xf32>
    %46 = arith.index_cast %c1_i32 : i32 to index
    %c0_22 = arith.constant 0 : index
    %c0_23 = arith.constant 0 : index
    %47 = vector.load %arg2[%46, %c0_22, %c0_23] : memref<8x8x512xbf16, #tpu.memory_space<vmem>>, vector<1x8x512xbf16>
    %48 = vector.shape_cast %47 : vector<1x8x512xbf16> to vector<8x512xbf16>
    %49 = arith.extf %48 : vector<8x512xbf16> to vector<8x512xf32>
    %c0_24 = arith.constant 0 : index
    %c0_25 = arith.constant 0 : index
    %50 = vector.load %arg7[%c0_24, %c0_25] : memref<128x512xbf16, #tpu.memory_space<vmem>>, vector<128x512xbf16>
    %cst_26 = arith.constant dense<0.000000e+00> : vector<8x512xf32>
    %51 = tpu.matmul %44, %50, %cst_26 {dimension_numbers = #tpu.dot_dimension_numbers<[1], [0], [0], [1], [0, 0, 1, 1], [], []>} : vector<8x128xbf16>, vector<128x512xbf16>, vector<8x512xf32> -> vector<8x512xf32>
    %52 = arith.addf %49, %51 : vector<8x512xf32>
    %53 = vector.extract_strided_slice %52 {offsets = [0, 0], sizes = [8, 128], strides = [1, 1]} : vector<8x512xf32> to vector<8x128xf32>
    %54 = arith.negf %53 : vector<8x128xf32>
    %55 = math.exp %54 : vector<8x128xf32>
    %cst_27 = arith.constant 1.000000e+00 : f32
    %56 = vector.broadcast %cst_27 : f32 to vector<8x128xf32>
    %57 = arith.addf %56, %55 : vector<8x128xf32>
    %58 = arith.divf %56, %57 : vector<8x128xf32>
    %59 = vector.extract_strided_slice %52 {offsets = [0, 128], sizes = [8, 128], strides = [1, 1]} : vector<8x512xf32> to vector<8x128xf32>
    %60 = arith.negf %59 : vector<8x128xf32>
    %61 = math.exp %60 : vector<8x128xf32>
    %cst_28 = arith.constant 1.000000e+00 : f32
    %62 = vector.broadcast %cst_28 : f32 to vector<8x128xf32>
    %63 = arith.addf %62, %61 : vector<8x128xf32>
    %64 = arith.divf %62, %63 : vector<8x128xf32>
    %65 = vector.extract_strided_slice %52 {offsets = [0, 256], sizes = [8, 128], strides = [1, 1]} : vector<8x512xf32> to vector<8x128xf32>
    %66 = math.tanh %65 : vector<8x128xf32>
    %67 = vector.extract_strided_slice %52 {offsets = [0, 384], sizes = [8, 128], strides = [1, 1]} : vector<8x512xf32> to vector<8x128xf32>
    %68 = arith.negf %67 : vector<8x128xf32>
    %69 = math.exp %68 : vector<8x128xf32>
    %cst_29 = arith.constant 1.000000e+00 : f32
    %70 = vector.broadcast %cst_29 : f32 to vector<8x128xf32>
    %71 = arith.addf %70, %69 : vector<8x128xf32>
    %72 = arith.divf %70, %71 : vector<8x128xf32>
    %73 = arith.mulf %64, %45 : vector<8x128xf32>
    %74 = arith.mulf %58, %66 : vector<8x128xf32>
    %75 = arith.addf %73, %74 : vector<8x128xf32>
    %76 = math.tanh %75 : vector<8x128xf32>
    %77 = arith.mulf %72, %76 : vector<8x128xf32>
    %78 = arith.truncf %77 : vector<8x128xf32> to vector<8x128xbf16>
    %c0_30 = arith.constant 0 : index
    %c0_31 = arith.constant 0 : index
    %79 = vector.load %arg6[%c0_30, %c0_31] : memref<8x128xf32, #tpu.memory_space<vmem>>, vector<8x128xf32>
    tpu.vector_store %arg6[%c0_30, %c0_31], %75 {strides = array<i32>} : memref<8x128xf32, #tpu.memory_space<vmem>>, vector<8x128xf32>,
    %c0_32 = arith.constant 0 : index
    %c0_33 = arith.constant 0 : index
    %80 = vector.load %arg5[%c0_32, %c0_33] : memref<8x128xbf16, #tpu.memory_space<vmem>>, vector<8x128xbf16>
    tpu.vector_store %arg5[%c0_32, %c0_33], %78 {strides = array<i32>} : memref<8x128xbf16, #tpu.memory_space<vmem>>, vector<8x128xbf16>,
    %81 = arith.index_cast %c1_i32 : i32 to index
    %c0_34 = arith.constant 0 : index
    %c0_35 = arith.constant 0 : index
    %82 = vector.load %arg4[%81, %c0_34, %c0_35] : memref<8x8x128xbf16, #tpu.memory_space<vmem>>, vector<1x8x128xbf16>
    %83 = vector.shape_cast %82 : vector<1x8x128xbf16> to vector<8x128xbf16>
    %84 = vector.shape_cast %78 : vector<8x128xbf16> to vector<1x8x128xbf16>
    tpu.vector_store %arg4[%81, %c0_34, %c0_35], %84 {strides = array<i32>} : memref<8x8x128xbf16, #tpu.memory_space<vmem>>, vector<1x8x128xbf16>,
    %c2_i32 = arith.constant 2 : i32
    %c0_36 = arith.constant 0 : index
    %c0_37 = arith.constant 0 : index
    %85 = vector.load %arg5[%c0_36, %c0_37] : memref<8x128xbf16, #tpu.memory_space<vmem>>, vector<8x128xbf16>
    %c0_38 = arith.constant 0 : index
    %c0_39 = arith.constant 0 : index
    %86 = vector.load %arg6[%c0_38, %c0_39] : memref<8x128xf32, #tpu.memory_space<vmem>>, vector<8x128xf32>
    %87 = arith.index_cast %c2_i32 : i32 to index
    %c0_40 = arith.constant 0 : index
    %c0_41 = arith.constant 0 : index
    %88 = vector.load %arg2[%87, %c0_40, %c0_41] : memref<8x8x512xbf16, #tpu.memory_space<vmem>>, vector<1x8x512xbf16>
    %89 = vector.shape_cast %88 : vector<1x8x512xbf16> to vector<8x512xbf16>
    %90 = arith.extf %89 : vector<8x512xbf16> to vector<8x512xf32>
    %c0_42 = arith.constant 0 : index
    %c0_43 = arith.constant 0 : index
    %91 = vector.load %arg7[%c0_42, %c0_43] : memref<128x512xbf16, #tpu.memory_space<vmem>>, vector<128x512xbf16>
    %cst_44 = arith.constant dense<0.000000e+00> : vector<8x512xf32>
    %92 = tpu.matmul %85, %91, %cst_44 {dimension_numbers = #tpu.dot_dimension_numbers<[1], [0], [0], [1], [0, 0, 1, 1], [], []>} : vector<8x128xbf16>, vector<128x512xbf16>, vector<8x512xf32> -> vector<8x512xf32>
    %93 = arith.addf %90, %92 : vector<8x512xf32>
    %94 = vector.extract_strided_slice %93 {offsets = [0, 0], sizes = [8, 128], strides = [1, 1]} : vector<8x512xf32> to vector<8x128xf32>
    %95 = arith.negf %94 : vector<8x128xf32>
    %96 = math.exp %95 : vector<8x128xf32>
    %cst_45 = arith.constant 1.000000e+00 : f32
    %97 = vector.broadcast %cst_45 : f32 to vector<8x128xf32>
    %98 = arith.addf %97, %96 : vector<8x128xf32>
    %99 = arith.divf %97, %98 : vector<8x128xf32>
    %100 = vector.extract_strided_slice %93 {offsets = [0, 128], sizes = [8, 128], strides = [1, 1]} : vector<8x512xf32> to vector<8x128xf32>
    %101 = arith.negf %100 : vector<8x128xf32>
    %102 = math.exp %101 : vector<8x128xf32>
    %cst_46 = arith.constant 1.000000e+00 : f32
    %103 = vector.broadcast %cst_46 : f32 to vector<8x128xf32>
    %104 = arith.addf %103, %102 : vector<8x128xf32>
    %105 = arith.divf %103, %104 : vector<8x128xf32>
    %106 = vector.extract_strided_slice %93 {offsets = [0, 256], sizes = [8, 128], strides = [1, 1]} : vector<8x512xf32> to vector<8x128xf32>
    %107 = math.tanh %106 : vector<8x128xf32>
    %108 = vector.extract_strided_slice %93 {offsets = [0, 384], sizes = [8, 128], strides = [1, 1]} : vector<8x512xf32> to vector<8x128xf32>
    %109 = arith.negf %108 : vector<8x128xf32>
    %110 = math.exp %109 : vector<8x128xf32>
    %cst_47 = arith.constant 1.000000e+00 : f32
    %111 = vector.broadcast %cst_47 : f32 to vector<8x128xf32>
    %112 = arith.addf %111, %110 : vector<8x128xf32>
    %113 = arith.divf %111, %112 : vector<8x128xf32>
    %114 = arith.mulf %105, %86 : vector<8x128xf32>
    %115 = arith.mulf %99, %107 : vector<8x128xf32>
    %116 = arith.addf %114, %115 : vector<8x128xf32>
    %117 = math.tanh %116 : vector<8x128xf32>
    %118 = arith.mulf %113, %117 : vector<8x128xf32>
    %119 = arith.truncf %118 : vector<8x128xf32> to vector<8x128xbf16>
    %c0_48 = arith.constant 0 : index
    %c0_49 = arith.constant 0 : index
    %120 = vector.load %arg6[%c0_48, %c0_49] : memref<8x128xf32, #tpu.memory_space<vmem>>, vector<8x128xf32>
    tpu.vector_store %arg6[%c0_48, %c0_49], %116 {strides = array<i32>} : memref<8x128xf32, #tpu.memory_space<vmem>>, vector<8x128xf32>,
    %c0_50 = arith.constant 0 : index
    %c0_51 = arith.constant 0 : index
    %121 = vector.load %arg5[%c0_50, %c0_51] : memref<8x128xbf16, #tpu.memory_space<vmem>>, vector<8x128xbf16>
    tpu.vector_store %arg5[%c0_50, %c0_51], %119 {strides = array<i32>} : memref<8x128xbf16, #tpu.memory_space<vmem>>, vector<8x128xbf16>,
    %122 = arith.index_cast %c2_i32 : i32 to index
    %c0_52 = arith.constant 0 : index
    %c0_53 = arith.constant 0 : index
    %123 = vector.load %arg4[%122, %c0_52, %c0_53] : memref<8x8x128xbf16, #tpu.memory_space<vmem>>, vector<1x8x128xbf16>
    %124 = vector.shape_cast %123 : vector<1x8x128xbf16> to vector<8x128xbf16>
    %125 = vector.shape_cast %119 : vector<8x128xbf16> to vector<1x8x128xbf16>
    tpu.vector_store %arg4[%122, %c0_52, %c0_53], %125 {strides = array<i32>} : memref<8x8x128xbf16, #tpu.memory_space<vmem>>, vector<1x8x128xbf16>,
    %c3_i32 = arith.constant 3 : i32
    %c0_54 = arith.constant 0 : index
    %c0_55 = arith.constant 0 : index
    %126 = vector.load %arg5[%c0_54, %c0_55] : memref<8x128xbf16, #tpu.memory_space<vmem>>, vector<8x128xbf16>
    %c0_56 = arith.constant 0 : index
    %c0_57 = arith.constant 0 : index
    %127 = vector.load %arg6[%c0_56, %c0_57] : memref<8x128xf32, #tpu.memory_space<vmem>>, vector<8x128xf32>
    %128 = arith.index_cast %c3_i32 : i32 to index
    %c0_58 = arith.constant 0 : index
    %c0_59 = arith.constant 0 : index
    %129 = vector.load %arg2[%128, %c0_58, %c0_59] : memref<8x8x512xbf16, #tpu.memory_space<vmem>>, vector<1x8x512xbf16>
    %130 = vector.shape_cast %129 : vector<1x8x512xbf16> to vector<8x512xbf16>
    %131 = arith.extf %130 : vector<8x512xbf16> to vector<8x512xf32>
    %c0_60 = arith.constant 0 : index
    %c0_61 = arith.constant 0 : index
    %132 = vector.load %arg7[%c0_60, %c0_61] : memref<128x512xbf16, #tpu.memory_space<vmem>>, vector<128x512xbf16>
    %cst_62 = arith.constant dense<0.000000e+00> : vector<8x512xf32>
    %133 = tpu.matmul %126, %132, %cst_62 {dimension_numbers = #tpu.dot_dimension_numbers<[1], [0], [0], [1], [0, 0, 1, 1], [], []>} : vector<8x128xbf16>, vector<128x512xbf16>, vector<8x512xf32> -> vector<8x512xf32>
    %134 = arith.addf %131, %133 : vector<8x512xf32>
    %135 = vector.extract_strided_slice %134 {offsets = [0, 0], sizes = [8, 128], strides = [1, 1]} : vector<8x512xf32> to vector<8x128xf32>
    %136 = arith.negf %135 : vector<8x128xf32>
    %137 = math.exp %136 : vector<8x128xf32>
    %cst_63 = arith.constant 1.000000e+00 : f32
    %138 = vector.broadcast %cst_63 : f32 to vector<8x128xf32>
    %139 = arith.addf %138, %137 : vector<8x128xf32>
    %140 = arith.divf %138, %139 : vector<8x128xf32>
    %141 = vector.extract_strided_slice %134 {offsets = [0, 128], sizes = [8, 128], strides = [1, 1]} : vector<8x512xf32> to vector<8x128xf32>
    %142 = arith.negf %141 : vector<8x128xf32>
    %143 = math.exp %142 : vector<8x128xf32>
    %cst_64 = arith.constant 1.000000e+00 : f32
    %144 = vector.broadcast %cst_64 : f32 to vector<8x128xf32>
    %145 = arith.addf %144, %143 : vector<8x128xf32>
    %146 = arith.divf %144, %145 : vector<8x128xf32>
    %147 = vector.extract_strided_slice %134 {offsets = [0, 256], sizes = [8, 128], strides = [1, 1]} : vector<8x512xf32> to vector<8x128xf32>
    %148 = math.tanh %147 : vector<8x128xf32>
    %149 = vector.extract_strided_slice %134 {offsets = [0, 384], sizes = [8, 128], strides = [1, 1]} : vector<8x512xf32> to vector<8x128xf32>
    %150 = arith.negf %149 : vector<8x128xf32>
    %151 = math.exp %150 : vector<8x128xf32>
    %cst_65 = arith.constant 1.000000e+00 : f32
    %152 = vector.broadcast %cst_65 : f32 to vector<8x128xf32>
    %153 = arith.addf %152, %151 : vector<8x128xf32>
    %154 = arith.divf %152, %153 : vector<8x128xf32>
    %155 = arith.mulf %146, %127 : vector<8x128xf32>
    %156 = arith.mulf %140, %148 : vector<8x128xf32>
    %157 = arith.addf %155, %156 : vector<8x128xf32>
    %158 = math.tanh %157 : vector<8x128xf32>
    %159 = arith.mulf %154, %158 : vector<8x128xf32>
    %160 = arith.truncf %159 : vector<8x128xf32> to vector<8x128xbf16>
    %c0_66 = arith.constant 0 : index
    %c0_67 = arith.constant 0 : index
    %161 = vector.load %arg6[%c0_66, %c0_67] : memref<8x128xf32, #tpu.memory_space<vmem>>, vector<8x128xf32>
    tpu.vector_store %arg6[%c0_66, %c0_67], %157 {strides = array<i32>} : memref<8x128xf32, #tpu.memory_space<vmem>>, vector<8x128xf32>,
    %c0_68 = arith.constant 0 : index
    %c0_69 = arith.constant 0 : index
    %162 = vector.load %arg5[%c0_68, %c0_69] : memref<8x128xbf16, #tpu.memory_space<vmem>>, vector<8x128xbf16>
    tpu.vector_store %arg5[%c0_68, %c0_69], %160 {strides = array<i32>} : memref<8x128xbf16, #tpu.memory_space<vmem>>, vector<8x128xbf16>,
    %163 = arith.index_cast %c3_i32 : i32 to index
    %c0_70 = arith.constant 0 : index
    %c0_71 = arith.constant 0 : index
    %164 = vector.load %arg4[%163, %c0_70, %c0_71] : memref<8x8x128xbf16, #tpu.memory_space<vmem>>, vector<1x8x128xbf16>
    %165 = vector.shape_cast %164 : vector<1x8x128xbf16> to vector<8x128xbf16>
    %166 = vector.shape_cast %160 : vector<8x128xbf16> to vector<1x8x128xbf16>
    tpu.vector_store %arg4[%163, %c0_70, %c0_71], %166 {strides = array<i32>} : memref<8x8x128xbf16, #tpu.memory_space<vmem>>, vector<1x8x128xbf16>,
    %c4_i32 = arith.constant 4 : i32
    %c0_72 = arith.constant 0 : index
    %c0_73 = arith.constant 0 : index
    %167 = vector.load %arg5[%c0_72, %c0_73] : memref<8x128xbf16, #tpu.memory_space<vmem>>, vector<8x128xbf16>
    %c0_74 = arith.constant 0 : index
    %c0_75 = arith.constant 0 : index
    %168 = vector.load %arg6[%c0_74, %c0_75] : memref<8x128xf32, #tpu.memory_space<vmem>>, vector<8x128xf32>
    %169 = arith.index_cast %c4_i32 : i32 to index
    %c0_76 = arith.constant 0 : index
    %c0_77 = arith.constant 0 : index
    %170 = vector.load %arg2[%169, %c0_76, %c0_77] : memref<8x8x512xbf16, #tpu.memory_space<vmem>>, vector<1x8x512xbf16>
    %171 = vector.shape_cast %170 : vector<1x8x512xbf16> to vector<8x512xbf16>
    %172 = arith.extf %171 : vector<8x512xbf16> to vector<8x512xf32>
    %c0_78 = arith.constant 0 : index
    %c0_79 = arith.constant 0 : index
    %173 = vector.load %arg7[%c0_78, %c0_79] : memref<128x512xbf16, #tpu.memory_space<vmem>>, vector<128x512xbf16>
    %cst_80 = arith.constant dense<0.000000e+00> : vector<8x512xf32>
    %174 = tpu.matmul %167, %173, %cst_80 {dimension_numbers = #tpu.dot_dimension_numbers<[1], [0], [0], [1], [0, 0, 1, 1], [], []>} : vector<8x128xbf16>, vector<128x512xbf16>, vector<8x512xf32> -> vector<8x512xf32>
    %175 = arith.addf %172, %174 : vector<8x512xf32>
    %176 = vector.extract_strided_slice %175 {offsets = [0, 0], sizes = [8, 128], strides = [1, 1]} : vector<8x512xf32> to vector<8x128xf32>
    %177 = arith.negf %176 : vector<8x128xf32>
    %178 = math.exp %177 : vector<8x128xf32>
    %cst_81 = arith.constant 1.000000e+00 : f32
    %179 = vector.broadcast %cst_81 : f32 to vector<8x128xf32>
    %180 = arith.addf %179, %178 : vector<8x128xf32>
    %181 = arith.divf %179, %180 : vector<8x128xf32>
    %182 = vector.extract_strided_slice %175 {offsets = [0, 128], sizes = [8, 128], strides = [1, 1]} : vector<8x512xf32> to vector<8x128xf32>
    %183 = arith.negf %182 : vector<8x128xf32>
    %184 = math.exp %183 : vector<8x128xf32>
    %cst_82 = arith.constant 1.000000e+00 : f32
    %185 = vector.broadcast %cst_82 : f32 to vector<8x128xf32>
    %186 = arith.addf %185, %184 : vector<8x128xf32>
    %187 = arith.divf %185, %186 : vector<8x128xf32>
    %188 = vector.extract_strided_slice %175 {offsets = [0, 256], sizes = [8, 128], strides = [1, 1]} : vector<8x512xf32> to vector<8x128xf32>
    %189 = math.tanh %188 : vector<8x128xf32>
    %190 = vector.extract_strided_slice %175 {offsets = [0, 384], sizes = [8, 128], strides = [1, 1]} : vector<8x512xf32> to vector<8x128xf32>
    %191 = arith.negf %190 : vector<8x128xf32>
    %192 = math.exp %191 : vector<8x128xf32>
    %cst_83 = arith.constant 1.000000e+00 : f32
    %193 = vector.broadcast %cst_83 : f32 to vector<8x128xf32>
    %194 = arith.addf %193, %192 : vector<8x128xf32>
    %195 = arith.divf %193, %194 : vector<8x128xf32>
    %196 = arith.mulf %187, %168 : vector<8x128xf32>
    %197 = arith.mulf %181, %189 : vector<8x128xf32>
    %198 = arith.addf %196, %197 : vector<8x128xf32>
    %199 = math.tanh %198 : vector<8x128xf32>
    %200 = arith.mulf %195, %199 : vector<8x128xf32>
    %201 = arith.truncf %200 : vector<8x128xf32> to vector<8x128xbf16>
    %c0_84 = arith.constant 0 : index
    %c0_85 = arith.constant 0 : index
    %202 = vector.load %arg6[%c0_84, %c0_85] : memref<8x128xf32, #tpu.memory_space<vmem>>, vector<8x128xf32>
    tpu.vector_store %arg6[%c0_84, %c0_85], %198 {strides = array<i32>} : memref<8x128xf32, #tpu.memory_space<vmem>>, vector<8x128xf32>,
    %c0_86 = arith.constant 0 : index
    %c0_87 = arith.constant 0 : index
    %203 = vector.load %arg5[%c0_86, %c0_87] : memref<8x128xbf16, #tpu.memory_space<vmem>>, vector<8x128xbf16>
    tpu.vector_store %arg5[%c0_86, %c0_87], %201 {strides = array<i32>} : memref<8x128xbf16, #tpu.memory_space<vmem>>, vector<8x128xbf16>,
    %204 = arith.index_cast %c4_i32 : i32 to index
    %c0_88 = arith.constant 0 : index
    %c0_89 = arith.constant 0 : index
    %205 = vector.load %arg4[%204, %c0_88, %c0_89] : memref<8x8x128xbf16, #tpu.memory_space<vmem>>, vector<1x8x128xbf16>
    %206 = vector.shape_cast %205 : vector<1x8x128xbf16> to vector<8x128xbf16>
    %207 = vector.shape_cast %201 : vector<8x128xbf16> to vector<1x8x128xbf16>
    tpu.vector_store %arg4[%204, %c0_88, %c0_89], %207 {strides = array<i32>} : memref<8x8x128xbf16, #tpu.memory_space<vmem>>, vector<1x8x128xbf16>,
    %c5_i32 = arith.constant 5 : i32
    %c0_90 = arith.constant 0 : index
    %c0_91 = arith.constant 0 : index
    %208 = vector.load %arg5[%c0_90, %c0_91] : memref<8x128xbf16, #tpu.memory_space<vmem>>, vector<8x128xbf16>
    %c0_92 = arith.constant 0 : index
    %c0_93 = arith.constant 0 : index
    %209 = vector.load %arg6[%c0_92, %c0_93] : memref<8x128xf32, #tpu.memory_space<vmem>>, vector<8x128xf32>
    %210 = arith.index_cast %c5_i32 : i32 to index
    %c0_94 = arith.constant 0 : index
    %c0_95 = arith.constant 0 : index
    %211 = vector.load %arg2[%210, %c0_94, %c0_95] : memref<8x8x512xbf16, #tpu.memory_space<vmem>>, vector<1x8x512xbf16>
    %212 = vector.shape_cast %211 : vector<1x8x512xbf16> to vector<8x512xbf16>
    %213 = arith.extf %212 : vector<8x512xbf16> to vector<8x512xf32>
    %c0_96 = arith.constant 0 : index
    %c0_97 = arith.constant 0 : index
    %214 = vector.load %arg7[%c0_96, %c0_97] : memref<128x512xbf16, #tpu.memory_space<vmem>>, vector<128x512xbf16>
    %cst_98 = arith.constant dense<0.000000e+00> : vector<8x512xf32>
    %215 = tpu.matmul %208, %214, %cst_98 {dimension_numbers = #tpu.dot_dimension_numbers<[1], [0], [0], [1], [0, 0, 1, 1], [], []>} : vector<8x128xbf16>, vector<128x512xbf16>, vector<8x512xf32> -> vector<8x512xf32>
    %216 = arith.addf %213, %215 : vector<8x512xf32>
    %217 = vector.extract_strided_slice %216 {offsets = [0, 0], sizes = [8, 128], strides = [1, 1]} : vector<8x512xf32> to vector<8x128xf32>
    %218 = arith.negf %217 : vector<8x128xf32>
    %219 = math.exp %218 : vector<8x128xf32>
    %cst_99 = arith.constant 1.000000e+00 : f32
    %220 = vector.broadcast %cst_99 : f32 to vector<8x128xf32>
    %221 = arith.addf %220, %219 : vector<8x128xf32>
    %222 = arith.divf %220, %221 : vector<8x128xf32>
    %223 = vector.extract_strided_slice %216 {offsets = [0, 128], sizes = [8, 128], strides = [1, 1]} : vector<8x512xf32> to vector<8x128xf32>
    %224 = arith.negf %223 : vector<8x128xf32>
    %225 = math.exp %224 : vector<8x128xf32>
    %cst_100 = arith.constant 1.000000e+00 : f32
    %226 = vector.broadcast %cst_100 : f32 to vector<8x128xf32>
    %227 = arith.addf %226, %225 : vector<8x128xf32>
    %228 = arith.divf %226, %227 : vector<8x128xf32>
    %229 = vector.extract_strided_slice %216 {offsets = [0, 256], sizes = [8, 128], strides = [1, 1]} : vector<8x512xf32> to vector<8x128xf32>
    %230 = math.tanh %229 : vector<8x128xf32>
    %231 = vector.extract_strided_slice %216 {offsets = [0, 384], sizes = [8, 128], strides = [1, 1]} : vector<8x512xf32> to vector<8x128xf32>
    %232 = arith.negf %231 : vector<8x128xf32>
    %233 = math.exp %232 : vector<8x128xf32>
    %cst_101 = arith.constant 1.000000e+00 : f32
    %234 = vector.broadcast %cst_101 : f32 to vector<8x128xf32>
    %235 = arith.addf %234, %233 : vector<8x128xf32>
    %236 = arith.divf %234, %235 : vector<8x128xf32>
    %237 = arith.mulf %228, %209 : vector<8x128xf32>
    %238 = arith.mulf %222, %230 : vector<8x128xf32>
    %239 = arith.addf %237, %238 : vector<8x128xf32>
    %240 = math.tanh %239 : vector<8x128xf32>
    %241 = arith.mulf %236, %240 : vector<8x128xf32>
    %242 = arith.truncf %241 : vector<8x128xf32> to vector<8x128xbf16>
    %c0_102 = arith.constant 0 : index
    %c0_103 = arith.constant 0 : index
    %243 = vector.load %arg6[%c0_102, %c0_103] : memref<8x128xf32, #tpu.memory_space<vmem>>, vector<8x128xf32>
    tpu.vector_store %arg6[%c0_102, %c0_103], %239 {strides = array<i32>} : memref<8x128xf32, #tpu.memory_space<vmem>>, vector<8x128xf32>,
    %c0_104 = arith.constant 0 : index
    %c0_105 = arith.constant 0 : index
    %244 = vector.load %arg5[%c0_104, %c0_105] : memref<8x128xbf16, #tpu.memory_space<vmem>>, vector<8x128xbf16>
    tpu.vector_store %arg5[%c0_104, %c0_105], %242 {strides = array<i32>} : memref<8x128xbf16, #tpu.memory_space<vmem>>, vector<8x128xbf16>,
    %245 = arith.index_cast %c5_i32 : i32 to index
    %c0_106 = arith.constant 0 : index
    %c0_107 = arith.constant 0 : index
    %246 = vector.load %arg4[%245, %c0_106, %c0_107] : memref<8x8x128xbf16, #tpu.memory_space<vmem>>, vector<1x8x128xbf16>
    %247 = vector.shape_cast %246 : vector<1x8x128xbf16> to vector<8x128xbf16>
    %248 = vector.shape_cast %242 : vector<8x128xbf16> to vector<1x8x128xbf16>
    tpu.vector_store %arg4[%245, %c0_106, %c0_107], %248 {strides = array<i32>} : memref<8x8x128xbf16, #tpu.memory_space<vmem>>, vector<1x8x128xbf16>,
    %c6_i32 = arith.constant 6 : i32
    %c0_108 = arith.constant 0 : index
    %c0_109 = arith.constant 0 : index
    %249 = vector.load %arg5[%c0_108, %c0_109] : memref<8x128xbf16, #tpu.memory_space<vmem>>, vector<8x128xbf16>
    %c0_110 = arith.constant 0 : index
    %c0_111 = arith.constant 0 : index
    %250 = vector.load %arg6[%c0_110, %c0_111] : memref<8x128xf32, #tpu.memory_space<vmem>>, vector<8x128xf32>
    %251 = arith.index_cast %c6_i32 : i32 to index
    %c0_112 = arith.constant 0 : index
    %c0_113 = arith.constant 0 : index
    %252 = vector.load %arg2[%251, %c0_112, %c0_113] : memref<8x8x512xbf16, #tpu.memory_space<vmem>>, vector<1x8x512xbf16>
    %253 = vector.shape_cast %252 : vector<1x8x512xbf16> to vector<8x512xbf16>
    %254 = arith.extf %253 : vector<8x512xbf16> to vector<8x512xf32>
    %c0_114 = arith.constant 0 : index
    %c0_115 = arith.constant 0 : index
    %255 = vector.load %arg7[%c0_114, %c0_115] : memref<128x512xbf16, #tpu.memory_space<vmem>>, vector<128x512xbf16>
    %cst_116 = arith.constant dense<0.000000e+00> : vector<8x512xf32>
    %256 = tpu.matmul %249, %255, %cst_116 {dimension_numbers = #tpu.dot_dimension_numbers<[1], [0], [0], [1], [0, 0, 1, 1], [], []>} : vector<8x128xbf16>, vector<128x512xbf16>, vector<8x512xf32> -> vector<8x512xf32>
    %257 = arith.addf %254, %256 : vector<8x512xf32>
    %258 = vector.extract_strided_slice %257 {offsets = [0, 0], sizes = [8, 128], strides = [1, 1]} : vector<8x512xf32> to vector<8x128xf32>
    %259 = arith.negf %258 : vector<8x128xf32>
    %260 = math.exp %259 : vector<8x128xf32>
    %cst_117 = arith.constant 1.000000e+00 : f32
    %261 = vector.broadcast %cst_117 : f32 to vector<8x128xf32>
    %262 = arith.addf %261, %260 : vector<8x128xf32>
    %263 = arith.divf %261, %262 : vector<8x128xf32>
    %264 = vector.extract_strided_slice %257 {offsets = [0, 128], sizes = [8, 128], strides = [1, 1]} : vector<8x512xf32> to vector<8x128xf32>
    %265 = arith.negf %264 : vector<8x128xf32>
    %266 = math.exp %265 : vector<8x128xf32>
    %cst_118 = arith.constant 1.000000e+00 : f32
    %267 = vector.broadcast %cst_118 : f32 to vector<8x128xf32>
    %268 = arith.addf %267, %266 : vector<8x128xf32>
    %269 = arith.divf %267, %268 : vector<8x128xf32>
    %270 = vector.extract_strided_slice %257 {offsets = [0, 256], sizes = [8, 128], strides = [1, 1]} : vector<8x512xf32> to vector<8x128xf32>
    %271 = math.tanh %270 : vector<8x128xf32>
    %272 = vector.extract_strided_slice %257 {offsets = [0, 384], sizes = [8, 128], strides = [1, 1]} : vector<8x512xf32> to vector<8x128xf32>
    %273 = arith.negf %272 : vector<8x128xf32>
    %274 = math.exp %273 : vector<8x128xf32>
    %cst_119 = arith.constant 1.000000e+00 : f32
    %275 = vector.broadcast %cst_119 : f32 to vector<8x128xf32>
    %276 = arith.addf %275, %274 : vector<8x128xf32>
    %277 = arith.divf %275, %276 : vector<8x128xf32>
    %278 = arith.mulf %269, %250 : vector<8x128xf32>
    %279 = arith.mulf %263, %271 : vector<8x128xf32>
    %280 = arith.addf %278, %279 : vector<8x128xf32>
    %281 = math.tanh %280 : vector<8x128xf32>
    %282 = arith.mulf %277, %281 : vector<8x128xf32>
    %283 = arith.truncf %282 : vector<8x128xf32> to vector<8x128xbf16>
    %c0_120 = arith.constant 0 : index
    %c0_121 = arith.constant 0 : index
    %284 = vector.load %arg6[%c0_120, %c0_121] : memref<8x128xf32, #tpu.memory_space<vmem>>, vector<8x128xf32>
    tpu.vector_store %arg6[%c0_120, %c0_121], %280 {strides = array<i32>} : memref<8x128xf32, #tpu.memory_space<vmem>>, vector<8x128xf32>,
    %c0_122 = arith.constant 0 : index
    %c0_123 = arith.constant 0 : index
    %285 = vector.load %arg5[%c0_122, %c0_123] : memref<8x128xbf16, #tpu.memory_space<vmem>>, vector<8x128xbf16>
    tpu.vector_store %arg5[%c0_122, %c0_123], %283 {strides = array<i32>} : memref<8x128xbf16, #tpu.memory_space<vmem>>, vector<8x128xbf16>,
    %286 = arith.index_cast %c6_i32 : i32 to index
    %c0_124 = arith.constant 0 : index
    %c0_125 = arith.constant 0 : index
    %287 = vector.load %arg4[%286, %c0_124, %c0_125] : memref<8x8x128xbf16, #tpu.memory_space<vmem>>, vector<1x8x128xbf16>
    %288 = vector.shape_cast %287 : vector<1x8x128xbf16> to vector<8x128xbf16>
    %289 = vector.shape_cast %283 : vector<8x128xbf16> to vector<1x8x128xbf16>
    tpu.vector_store %arg4[%286, %c0_124, %c0_125], %289 {strides = array<i32>} : memref<8x8x128xbf16, #tpu.memory_space<vmem>>, vector<1x8x128xbf16>,
    %c7_i32 = arith.constant 7 : i32
    %c0_126 = arith.constant 0 : index
    %c0_127 = arith.constant 0 : index
    %290 = vector.load %arg5[%c0_126, %c0_127] : memref<8x128xbf16, #tpu.memory_space<vmem>>, vector<8x128xbf16>
    %c0_128 = arith.constant 0 : index
    %c0_129 = arith.constant 0 : index
    %291 = vector.load %arg6[%c0_128, %c0_129] : memref<8x128xf32, #tpu.memory_space<vmem>>, vector<8x128xf32>
    %292 = arith.index_cast %c7_i32 : i32 to index
    %c0_130 = arith.constant 0 : index
    %c0_131 = arith.constant 0 : index
    %293 = vector.load %arg2[%292, %c0_130, %c0_131] : memref<8x8x512xbf16, #tpu.memory_space<vmem>>, vector<1x8x512xbf16>
    %294 = vector.shape_cast %293 : vector<1x8x512xbf16> to vector<8x512xbf16>
    %295 = arith.extf %294 : vector<8x512xbf16> to vector<8x512xf32>
    %c0_132 = arith.constant 0 : index
    %c0_133 = arith.constant 0 : index
    %296 = vector.load %arg7[%c0_132, %c0_133] : memref<128x512xbf16, #tpu.memory_space<vmem>>, vector<128x512xbf16>
    %cst_134 = arith.constant dense<0.000000e+00> : vector<8x512xf32>
    %297 = tpu.matmul %290, %296, %cst_134 {dimension_numbers = #tpu.dot_dimension_numbers<[1], [0], [0], [1], [0, 0, 1, 1], [], []>} : vector<8x128xbf16>, vector<128x512xbf16>, vector<8x512xf32> -> vector<8x512xf32>
    %298 = arith.addf %295, %297 : vector<8x512xf32>
    %299 = vector.extract_strided_slice %298 {offsets = [0, 0], sizes = [8, 128], strides = [1, 1]} : vector<8x512xf32> to vector<8x128xf32>
    %300 = arith.negf %299 : vector<8x128xf32>
    %301 = math.exp %300 : vector<8x128xf32>
    %cst_135 = arith.constant 1.000000e+00 : f32
    %302 = vector.broadcast %cst_135 : f32 to vector<8x128xf32>
    %303 = arith.addf %302, %301 : vector<8x128xf32>
    %304 = arith.divf %302, %303 : vector<8x128xf32>
    %305 = vector.extract_strided_slice %298 {offsets = [0, 128], sizes = [8, 128], strides = [1, 1]} : vector<8x512xf32> to vector<8x128xf32>
    %306 = arith.negf %305 : vector<8x128xf32>
    %307 = math.exp %306 : vector<8x128xf32>
    %cst_136 = arith.constant 1.000000e+00 : f32
    %308 = vector.broadcast %cst_136 : f32 to vector<8x128xf32>
    %309 = arith.addf %308, %307 : vector<8x128xf32>
    %310 = arith.divf %308, %309 : vector<8x128xf32>
    %311 = vector.extract_strided_slice %298 {offsets = [0, 256], sizes = [8, 128], strides = [1, 1]} : vector<8x512xf32> to vector<8x128xf32>
    %312 = math.tanh %311 : vector<8x128xf32>
    %313 = vector.extract_strided_slice %298 {offsets = [0, 384], sizes = [8, 128], strides = [1, 1]} : vector<8x512xf32> to vector<8x128xf32>
    %314 = arith.negf %313 : vector<8x128xf32>
    %315 = math.exp %314 : vector<8x128xf32>
    %cst_137 = arith.constant 1.000000e+00 : f32
    %316 = vector.broadcast %cst_137 : f32 to vector<8x128xf32>
    %317 = arith.addf %316, %315 : vector<8x128xf32>
    %318 = arith.divf %316, %317 : vector<8x128xf32>
    %319 = arith.mulf %310, %291 : vector<8x128xf32>
    %320 = arith.mulf %304, %312 : vector<8x128xf32>
    %321 = arith.addf %319, %320 : vector<8x128xf32>
    %322 = math.tanh %321 : vector<8x128xf32>
    %323 = arith.mulf %318, %322 : vector<8x128xf32>
    %324 = arith.truncf %323 : vector<8x128xf32> to vector<8x128xbf16>
    %c0_138 = arith.constant 0 : index
    %c0_139 = arith.constant 0 : index
    %325 = vector.load %arg6[%c0_138, %c0_139] : memref<8x128xf32, #tpu.memory_space<vmem>>, vector<8x128xf32>
    tpu.vector_store %arg6[%c0_138, %c0_139], %321 {strides = array<i32>} : memref<8x128xf32, #tpu.memory_space<vmem>>, vector<8x128xf32>,
    %c0_140 = arith.constant 0 : index
    %c0_141 = arith.constant 0 : index
    %326 = vector.load %arg5[%c0_140, %c0_141] : memref<8x128xbf16, #tpu.memory_space<vmem>>, vector<8x128xbf16>
    tpu.vector_store %arg5[%c0_140, %c0_141], %324 {strides = array<i32>} : memref<8x128xbf16, #tpu.memory_space<vmem>>, vector<8x128xbf16>,
    %327 = arith.index_cast %c7_i32 : i32 to index
    %c0_142 = arith.constant 0 : index
    %c0_143 = arith.constant 0 : index
    %328 = vector.load %arg4[%327, %c0_142, %c0_143] : memref<8x8x128xbf16, #tpu.memory_space<vmem>>, vector<1x8x128xbf16>
    %329 = vector.shape_cast %328 : vector<1x8x128xbf16> to vector<8x128xbf16>
    %330 = vector.shape_cast %324 : vector<8x128xbf16> to vector<1x8x128xbf16>
    tpu.vector_store %arg4[%327, %c0_142, %c0_143], %330 {strides = array<i32>} : memref<8x8x128xbf16, #tpu.memory_space<vmem>>, vector<1x8x128xbf16>,
    %c8_i32 = arith.constant 8 : i32
    return
  }
  func.func @transform_0(%arg0: i32, %arg1: i32) -> (i32, i32, i32) {
    %c0_i32 = arith.constant 0 : i32
    %c0_i32_0 = arith.constant 0 : i32
    return %arg1, %arg0, %c0_i32 : i32, i32, i32
  }
  func.func @transform_2(%arg0: i32, %arg1: i32) -> (i32, i32, i32) {
    %c0_i32 = arith.constant 0 : i32
    %c0_i32_0 = arith.constant 0 : i32
    return %arg1, %arg0, %c0_i32 : i32, i32, i32
  }
}

</mosaic_0001>

<llo_original>
// kernel: tpu_custom_call.1
$region0: #{tpu_custom_call.1}
  #allocation0 [shape = 'u32[]', space=smem, size = 0x4, offset = 0x4, fixed_abs, tag = 'smem constant byte address 0x4 - core index']
  #allocation1 [shape = 'u32[144,128]{1,0:T(1,128)}', space=vmem, size = 0x12000, scoped, tag = 'internal scratch']
  #allocation2 [shape = 'bf16[8,128]{1,0:T(8,128)(2,1)}', space=vmem, size = 0x800, scoped, tag = 'scratch operand']
  #allocation3 [shape = 'f32[8,128]{1,0:T(8,128)}', space=vmem, size = 0x1000, scoped, tag = 'scratch operand']
  #allocation4 [shape = 'bf16[128,512]{1,0:T(16,128)(2,1)}', space=vmem, size = 0x20000, scoped, tag = 'scratch operand']
  #allocation5 [shape = 's32[1]{0}', space=sflag, size = 0x4, scoped, tag = 'scratch operand']
  #allocation10 [shape = 's32[]', space=sflag, size = 0x4, offset = 0, fixed_abs, tag = 'sflag constant byte address 0x0 - dummy sync flag']
  %s0 = inlined_call_operand.hbm [shape: bf16[8,8,512], index: 0, kind: input, shape index: {}]
  %s1 = inlined_call_operand.hbm [shape: bf16[128,512], index: 1, kind: input, shape index: {}]
  %s2 = inlined_call_operand.hbm [shape: bf16[8,8,128], index: 2, kind: output, shape index: {}]
  %s3 = sld [smem:[#allocation0]]
  $region22: #{tpu_custom_call.1} parent=0
    _
  %s5 = ssub.s32 1, %s3
  %s6 = scalar_select 0, %s5, %s3
  $region1: #{tpu_custom_call.1} parent=0
    #allocation6 [shape = 'u8[65536]{0}', space=vmem, size = 0x10000, scoped, tag = 'input window, operand 0, single buffered']
    #allocation7 [shape = 's32[1]{0}', space=sflag, size = 0x4, scoped, tag = 'scoped memory for tpu_custom_call.1']
    #allocation8 [shape = 's32[1]{0}', space=sflag, size = 0x4, scoped, tag = 'scoped memory for tpu_custom_call.1']
    #allocation9 [shape = 'u8[16384]{0}', space=vmem, size = 0x4000, scoped, tag = 'output window, operand 0, single buffered']
    %7 = vsyncpa [#allocation7], 0
    %8 = vsyncpa [#allocation8], 0
    // Predicated region
    $region2: #{tpu_custom_call.1} parent=1 // pred_check
      _
    $region3: #{tpu_custom_call.1} parent=1 // pred_check_branch
      %10 = sbr.rel (0) target = $region5
    $region4: #{tpu_custom_call.1} parent=1 // pred_region
      %s12 = ssub.s32 2048, 2048
      %13 = vsyncadd [#allocation7], %s12
      %s14 = sshll.u32 [#allocation6], 4
      %s15 = int_to_ptr.vmem [resolvable:$true] %s14
      %20 = dma.hbm_to_vmem [thread:$0]  %s0, 2048, %s15, [#allocation7], 256, 256, 16
    $region5: #{tpu_custom_call.1} parent=1 // pred_fallthru
      _
    // Predicated region
    $region6: #{tpu_custom_call.1} parent=1 // pred_check
      _
    $region7: #{tpu_custom_call.1} parent=1 // pred_check_branch
      %22 = sbr.rel (0) target = $region9
    $region8: #{tpu_custom_call.1} parent=1 // pred_region
      %23 = dma.done [#allocation7], 2048
    $region9: #{tpu_custom_call.1} parent=1 // pred_fallthru
      _
    %p25 = scmp.eq.s32.totalorder 0, 0
    // Predicated region
    $region10: #{tpu_custom_call.1} parent=1 // pred_check
      %p26 = pneg %p25
    $region11: #{tpu_custom_call.1} parent=1 // pred_check_branch
      %28 = sbr.rel (%p26) target = $region13
    $region12: #{tpu_custom_call.1} parent=1 // pred_region
      #allocation11 [shape = 'u32[9]{0}', space=smem, size = 0x24, scoped, tag = 'DMA stride descriptor']
      %s30 = sshll.u32 1, 14
      %s31 = sxor.u32 4294967295, %s30
      %s33 = sld [smem:[#allocation0]]
      %s34 = sadd.s32 2, %s33
      %s36 = sshll.u32 7, 26
      %s37 = sxor.u32 4294967295, %s36
      %s38 = sand.u32 0, %s37
      %s39 = sshll.u32 %s34, 26
      %s40 = sor.u32 %s38, %s39
      %s41 = sshll.u32 [#allocation4], 4
      %s42 = int_to_ptr.vmem [resolvable:$true] %s41
      %45 = sst [smem:[#allocation11]] 512
      %s46 = scalar_lea.smem [#allocation11], 1
      %47 = sst [smem:[%s46]] 512
      %s48 = scalar_lea.smem [#allocation11], 2
      %49 = sst [smem:[%s48]] 4
      %s50 = scalar_lea.smem [#allocation11], 3
      %51 = sst [smem:[%s50]] 64
      %s52 = scalar_lea.smem [#allocation11], 4
      %53 = sst [smem:[%s52]] 128
      %s54 = scalar_lea.smem [#allocation11], 5
      %55 = sst [smem:[%s54]] 2
      %s56 = scalar_lea.smem [#allocation11], 6
      %57 = sst [smem:[%s56]] 256
      %s58 = scalar_lea.smem [#allocation11], 7
      %59 = sst [smem:[%s58]] 64
      %s60 = scalar_lea.smem [#allocation11], 8
      %61 = sst [smem:[%s60]] 4
      %63 = dma.general %s1, 4096, %s42, [#allocation5], [#allocation10], [#allocation11], %s40, 0
      %64 = vst [vmem:[#allocation2] sm:$0xf] 0
      %65 = vst [vmem:[#allocation3] sm:$0xff] 0.0
      %s66 = smul.u32 4, 16
      %s67 = smul.u32 %s66, 4
      %s68 = sshll.u32 %s67, 4
      %69 = dma.done [#allocation5], %s68
    $region13: #{tpu_custom_call.1} parent=1 // pred_fallthru
      _
    %v70 = vld [vmem:[#allocation2] sm:$0xf]
    %v71 = vld [vmem:[#allocation3] sm:$0xff]
    %v72 = vld [vmem:[#allocation6] sm:$0xff]
    %v73 = vld [vmem:[#allocation6 + $0x8] sm:$0xff]
    %v74 = vunpack.c.l.bf16 %v72
    %v75 = vunpack.c.h.bf16 %v72
    %v76 = vunpack.c.l.bf16 %v73
    %v77 = vunpack.c.h.bf16 %v73
    %v78 = vld [vmem:[#allocation4] sm:$0xff]
    %v79 = vld [vmem:[#allocation4 + $0x8] sm:$0xff]
    %v80 = vld [vmem:[#allocation4 + $0x10] sm:$0xff]
    %v81 = vld [vmem:[#allocation4 + $0x18] sm:$0xff]
    %v82 = vld [vmem:[#allocation4 + $0x20] sm:$0xff]
    %v83 = vld [vmem:[#allocation4 + $0x28] sm:$0xff]
    %v84 = vld [vmem:[#allocation4 + $0x30] sm:$0xff]
    %v85 = vld [vmem:[#allocation4 + $0x38] sm:$0xff]
    %v86 = vld [vmem:[#allocation4 + $0x40] sm:$0xff]
    %v87 = vld [vmem:[#allocation4 + $0x48] sm:$0xff]
    %v88 = vld [vmem:[#allocation4 + $0x50] sm:$0xff]
    %v89 = vld [vmem:[#allocation4 + $0x58] sm:$0xff]
    %v90 = vld [vmem:[#allocation4 + $0x60] sm:$0xff]
    %v91 = vld [vmem:[#allocation4 + $0x68] sm:$0xff]
    %v92 = vld [vmem:[#allocation4 + $0x70] sm:$0xff]
    %v93 = vld [vmem:[#allocation4 + $0x78] sm:$0xff]
    %v94 = vld [vmem:[#allocation4 + $0x80] sm:$0xff]
    %v95 = vld [vmem:[#allocation4 + $0x88] sm:$0xff]
    %v96 = vld [vmem:[#allocation4 + $0x90] sm:$0xff]
    %v97 = vld [vmem:[#allocation4 + $0x98] sm:$0xff]
    %v98 = vld [vmem:[#allocation4 + $0xa0] sm:$0xff]
    %v99 = vld [vmem:[#allocation4 + $0xa8] sm:$0xff]
    %v100 = vld [vmem:[#allocation4 + $0xb0] sm:$0xff]
    %v101 = vld [vmem:[#allocation4 + $0xb8] sm:$0xff]
    %v102 = vld [vmem:[#allocation4 + $0xc0] sm:$0xff]
    %v103 = vld [vmem:[#allocation4 + $0xc8] sm:$0xff]
    %v104 = vld [vmem:[#allocation4 + $0xd0] sm:$0xff]
    %v105 = vld [vmem:[#allocation4 + $0xd8] sm:$0xff]
    %v106 = vld [vmem:[#allocation4 + $0xe0] sm:$0xff]
    %v107 = vld [vmem:[#allocation4 + $0xe8] sm:$0xff]
    %v108 = vld [vmem:[#allocation4 + $0xf0] sm:$0xff]
    %v109 = vld [vmem:[#allocation4 + $0xf8] sm:$0xff]
    %110 = vmatprep.subr.bf16.mxu0 %v79
    %111 = vmatpush1.bf16.msra.mxu0 %v78
    %112 = vmatprep.subr.bf16.mxu0 %v83
    %113 = vmatpush1.bf16.msra.mxu0 %v82
    %114 = vmatprep.subr.bf16.mxu0 %v87
    %115 = vmatpush1.bf16.msra.mxu0 %v86
    %116 = vmatprep.subr.bf16.mxu0 %v91
    %117 = vmatpush1.bf16.msra.mxu0 %v90
    %118 = vmatprep.subr.bf16.mxu0 %v95
    %119 = vmatpush1.bf16.msra.mxu0 %v94
    %120 = vmatprep.subr.bf16.mxu0 %v99
    %121 = vmatpush1.bf16.msra.mxu0 %v98
    %122 = vmatprep.subr.bf16.mxu0 %v103
    %123 = vmatpush1.bf16.msra.mxu0 %v102
    %124 = vmatprep.subr.bf16.mxu0 %v107
    %125 = vmatpush1.bf16.msra.mxu0 %v106
    %126 = vmatprep.subr.bf16.mxu0 0
    %127 = vmatpush1.bf16.msra.mxu0 0
    %128 = vmatprep.subr.bf16.mxu0 0
    %129 = vmatpush1.bf16.msra.mxu0 0
    %130 = vmatprep.subr.bf16.mxu0 0
    %131 = vmatpush1.bf16.msra.mxu0 0
    %132 = vmatprep.subr.bf16.mxu0 0
    %133 = vmatpush1.bf16.msra.mxu0 0
    %134 = vmatprep.subr.bf16.mxu0 0
    %135 = vmatpush1.bf16.msra.mxu0 0
    %136 = vmatprep.subr.bf16.mxu0 0
    %137 = vmatpush1.bf16.msra.mxu0 0
    %138 = vmatprep.subr.bf16.mxu0 0
    %139 = vmatpush1.bf16.msra.mxu0 0
    %140 = vmatprep.subr.bf16.mxu0 0
    %141 = vmatpush1.bf16.msra.mxu0 0
    %142 = vmatprep.mubr.bf16.mxu0 0
    %143 = vmatmul.mubr.bf16.gmra.mrb[0].mxu0 %v70
    %v144 = vpop.f32.mrb[0].mxu0
    %v145 = vadd.f32 0.0, %v144
    %v146 = vpop.f32.mrb[0].mxu0
    %v147 = vadd.f32 0.0, %v146
    %v148 = vpop.f32.mrb[0].mxu0
    %v149 = vpop.f32.mrb[0].mxu0
    %150 = vdwg.mxu0
    %151 = vmatprep.subr.bf16.mxu0 %v81
    %152 = vmatpush1.bf16.msra.mxu0 %v80
    %153 = vmatprep.subr.bf16.mxu0 %v85
    %154 = vmatpush1.bf16.msra.mxu0 %v84
    %155 = vmatprep.subr.bf16.mxu0 %v89
    %156 = vmatpush1.bf16.msra.mxu0 %v88
    %157 = vmatprep.subr.bf16.mxu0 %v93
    %158 = vmatpush1.bf16.msra.mxu0 %v92
    %159 = vmatprep.subr.bf16.mxu0 %v97
    %160 = vmatpush1.bf16.msra.mxu0 %v96
    %161 = vmatprep.subr.bf16.mxu0 %v101
    %162 = vmatpush1.bf16.msra.mxu0 %v100
    %163 = vmatprep.subr.bf16.mxu0 %v105
    %164 = vmatpush1.bf16.msra.mxu0 %v104
    %165 = vmatprep.subr.bf16.mxu0 %v109
    %166 = vmatpush1.bf16.msra.mxu0 %v108
    %167 = vmatprep.subr.bf16.mxu0 0
    %168 = vmatpush1.bf16.msra.mxu0 0
    %169 = vmatprep.subr.bf16.mxu0 0
    %170 = vmatpush1.bf16.msra.mxu0 0
    %171 = vmatprep.subr.bf16.mxu0 0
    %172 = vmatpush1.bf16.msra.mxu0 0
    %173 = vmatprep.subr.bf16.mxu0 0
    %174 = vmatpush1.bf16.msra.mxu0 0
    %175 = vmatprep.subr.bf16.mxu0 0
    %176 = vmatpush1.bf16.msra.mxu0 0
    %177 = vmatprep.subr.bf16.mxu0 0
    %178 = vmatpush1.bf16.msra.mxu0 0
    %179 = vmatprep.subr.bf16.mxu0 0
    %180 = vmatpush1.bf16.msra.mxu0 0
    %181 = vmatprep.subr.bf16.mxu0 0
    %182 = vmatpush1.bf16.msra.mxu0 0
    %183 = vmatprep.mubr.bf16.mxu0 0
    %184 = vmatmul.mubr.bf16.gmra.mrb[0].mxu0 %v70
    %v185 = vpop.f32.mrb[0].mxu0
    %v186 = vadd.f32 0.0, %v185
    %v187 = vpop.f32.mrb[0].mxu0
    %v188 = vadd.f32 0.0, %v187
    %v189 = vpop.f32.mrb[0].mxu0
    %v190 = vpop.f32.mrb[0].mxu0
    %191 = vdwg.mxu0
    %v192 = vadd.f32 %v74, %v145
    %v193 = vadd.f32 %v75, %v147
    %v194 = vadd.f32 %v76, %v186
    %v195 = vadd.f32 %v77, %v188
    %v196 = vxor.u32 %v192, 2147483648
    %v197 = vmul.f32 %v196, 1.442695
    %v198 = vpow.pop %v197
    %v199 = vadd.f32 %v198, 1.0
    %v200 = vrcp.pop %v199
    %v201 = vmul.f32 1.0, %v200
    %v202 = vxor.u32 %v193, 2147483648
    %v203 = vmul.f32 %v202, 1.442695
    %v204 = vpow.pop %v203
    %v205 = vadd.f32 %v204, 1.0
    %v206 = vrcp.pop %v205
    %v207 = vmul.f32 1.0, %v206
    %v208 = vtanh.pop %v194
    %v209 = vxor.u32 %v195, 2147483648
    %v210 = vmul.f32 %v209, 1.442695
    %v211 = vpow.pop %v210
    %v212 = vadd.f32 %v211, 1.0
    %v213 = vrcp.pop %v212
    %v214 = vmul.f32 1.0, %v213
    %v215 = vmul.f32 %v207, %v71
    %v216 = vmul.f32 %v201, %v208
    %v217 = vadd.f32 %v215, %v216
    %v218 = vtanh.pop %v217
    %v219 = vmul.f32 %v214, %v218
    %v220 = vpack.c.bf16 %v219, %v219
    %221 = vst [vmem:[#allocation3] sm:$0xff] %v217
    %222 = vst [vmem:[#allocation2] sm:$0xf] %v220
    %223 = vst [vmem:[#allocation9] sm:$0xf] %v220
    %v224 = vld [vmem:[#allocation2] sm:$0xf]
    %v225 = vld [vmem:[#allocation3] sm:$0xff]
    %s226 = scalar_lea.vmem [#allocation6], 16
    %v227 = vld [vmem:[%s226] sm:$0xff]
    %v228 = vld [vmem:[%s226 + $0x8] sm:$0xff]
    %v229 = vunpack.c.l.bf16 %v227
    %v230 = vunpack.c.h.bf16 %v227
    %v231 = vunpack.c.l.bf16 %v228
    %v232 = vunpack.c.h.bf16 %v228
    %v233 = vld [vmem:[#allocation4] sm:$0xff]
    %v234 = vld [vmem:[#allocation4 + $0x8] sm:$0xff]
    %v235 = vld [vmem:[#allocation4 + $0x10] sm:$0xff]
    %v236 = vld [vmem:[#allocation4 + $0x18] sm:$0xff]
    %v237 = vld [vmem:[#allocation4 + $0x20] sm:$0xff]
    %v238 = vld [vmem:[#allocation4 + $0x28] sm:$0xff]
    %v239 = vld [vmem:[#allocation4 + $0x30] sm:$0xff]
    %v240 = vld [vmem:[#allocation4 + $0x38] sm:$0xff]
    %v241 = vld [vmem:[#allocation4 + $0x40] sm:$0xff]
    %v242 = vld [vmem:[#allocation4 + $0x48] sm:$0xff]
    %v243 = vld [vmem:[#allocation4 + $0x50] sm:$0xff]
    %v244 = vld [vmem:[#allocation4 + $0x58] sm:$0xff]
    %v245 = vld [vmem:[#allocation4 + $0x60] sm:$0xff]
    %v246 = vld [vmem:[#allocation4 + $0x68] sm:$0xff]
    %v247 = vld [vmem:[#allocation4 + $0x70] sm:$0xff]
    %v248 = vld [vmem:[#allocation4 + $0x78] sm:$0xff]
    %v249 = vld [vmem:[#allocation4 + $0x80] sm:$0xff]
    %v250 = vld [vmem:[#allocation4 + $0x88] sm:$0xff]
    %v251 = vld [vmem:[#allocation4 + $0x90] sm:$0xff]
    %v252 = vld [vmem:[#allocation4 + $0x98] sm:$0xff]
    %v253 = vld [vmem:[#allocation4 + $0xa0] sm:$0xff]
    %v254 = vld [vmem:[#allocation4 + $0xa8] sm:$0xff]
    %v255 = vld [vmem:[#allocation4 + $0xb0] sm:$0xff]
    %v256 = vld [vmem:[#allocation4 + $0xb8] sm:$0xff]
    %v257 = vld [vmem:[#allocation4 + $0xc0] sm:$0xff]
    %v258 = vld [vmem:[#allocation4 + $0xc8] sm:$0xff]
    %v259 = vld [vmem:[#allocation4 + $0xd0] sm:$0xff]
    %v260 = vld [vmem:[#allocation4 + $0xd8] sm:$0xff]
    %v261 = vld [vmem:[#allocation4 + $0xe0] sm:$0xff]
    %v262 = vld [vmem:[#allocation4 + $0xe8] sm:$0xff]
    %v263 = vld [vmem:[#allocation4 + $0xf0] sm:$0xff]
    %v264 = vld [vmem:[#allocation4 + $0xf8] sm:$0xff]
    %265 = vmatprep.subr.bf16.mxu0 %v234
    %266 = vmatpush1.bf16.msra.mxu0 %v233
    %267 = vmatprep.subr.bf16.mxu0 %v238
    %268 = vmatpush1.bf16.msra.mxu0 %v237
    %269 = vmatprep.subr.bf16.mxu0 %v242
    %270 = vmatpush1.bf16.msra.mxu0 %v241
    %271 = vmatprep.subr.bf16.mxu0 %v246
    %272 = vmatpush1.bf16.msra.mxu0 %v245
    %273 = vmatprep.subr.bf16.mxu0 %v250
    %274 = vmatpush1.bf16.msra.mxu0 %v249
    %275 = vmatprep.subr.bf16.mxu0 %v254
    %276 = vmatpush1.bf16.msra.mxu0 %v253
    %277 = vmatprep.subr.bf16.mxu0 %v258
    %278 = vmatpush1.bf16.msra.mxu0 %v257
    %279 = vmatprep.subr.bf16.mxu0 %v262
    %280 = vmatpush1.bf16.msra.mxu0 %v261
    %281 = vmatprep.subr.bf16.mxu0 0
    %282 = vmatpush1.bf16.msra.mxu0 0
    %283 = vmatprep.subr.bf16.mxu0 0
    %284 = vmatpush1.bf16.msra.mxu0 0
    %285 = vmatprep.subr.bf16.mxu0 0
    %286 = vmatpush1.bf16.msra.mxu0 0
    %287 = vmatprep.subr.bf16.mxu0 0
    %288 = vmatpush1.bf16.msra.mxu0 0
    %289 = vmatprep.subr.bf16.mxu0 0
    %290 = vmatpush1.bf16.msra.mxu0 0
    %291 = vmatprep.subr.bf16.mxu0 0
    %292 = vmatpush1.bf16.msra.mxu0 0
    %293 = vmatprep.subr.bf16.mxu0 0
    %294 = vmatpush1.bf16.msra.mxu0 0
    %295 = vmatprep.subr.bf16.mxu0 0
    %296 = vmatpush1.bf16.msra.mxu0 0
    %297 = vmatprep.mubr.bf16.mxu0 0
    %298 = vmatmul.mubr.bf16.gmra.mrb[0].mxu0 %v224
    %v299 = vpop.f32.mrb[0].mxu0
    %v300 = vadd.f32 0.0, %v299
    %v301 = vpop.f32.mrb[0].mxu0
    %v302 = vadd.f32 0.0, %v301
    %v303 = vpop.f32.mrb[0].mxu0
    %v304 = vpop.f32.mrb[0].mxu0
    %305 = vdwg.mxu0
    %306 = vmatprep.subr.bf16.mxu0 %v236
    %307 = vmatpush1.bf16.msra.mxu0 %v235
    %308 = vmatprep.subr.bf16.mxu0 %v240
    %309 = vmatpush1.bf16.msra.mxu0 %v239
    %310 = vmatprep.subr.bf16.mxu0 %v244
    %311 = vmatpush1.bf16.msra.mxu0 %v243
    %312 = vmatprep.subr.bf16.mxu0 %v248
    %313 = vmatpush1.bf16.msra.mxu0 %v247
    %314 = vmatprep.subr.bf16.mxu0 %v252
    %315 = vmatpush1.bf16.msra.mxu0 %v251
    %316 = vmatprep.subr.bf16.mxu0 %v256
    %317 = vmatpush1.bf16.msra.mxu0 %v255
    %318 = vmatprep.subr.bf16.mxu0 %v260
    %319 = vmatpush1.bf16.msra.mxu0 %v259
    %320 = vmatprep.subr.bf16.mxu0 %v264
    %321 = vmatpush1.bf16.msra.mxu0 %v263
    %322 = vmatprep.subr.bf16.mxu0 0
    %323 = vmatpush1.bf16.msra.mxu0 0
    %324 = vmatprep.subr.bf16.mxu0 0
    %325 = vmatpush1.bf16.msra.mxu0 0
    %326 = vmatprep.subr.bf16.mxu0 0
    %327 = vmatpush1.bf16.msra.mxu0 0
    %328 = vmatprep.subr.bf16.mxu0 0
    %329 = vmatpush1.bf16.msra.mxu0 0
    %330 = vmatprep.subr.bf16.mxu0 0
    %331 = vmatpush1.bf16.msra.mxu0 0
    %332 = vmatprep.subr.bf16.mxu0 0
    %333 = vmatpush1.bf16.msra.mxu0 0
    %334 = vmatprep.subr.bf16.mxu0 0
    %335 = vmatpush1.bf16.msra.mxu0 0
    %336 = vmatprep.subr.bf16.mxu0 0
    %337 = vmatpush1.bf16.msra.mxu0 0
    %338 = vmatprep.mubr.bf16.mxu0 0
    %339 = vmatmul.mubr.bf16.gmra.mrb[0].mxu0 %v224
    %v340 = vpop.f32.mrb[0].mxu0
    %v341 = vadd.f32 0.0, %v340
    %v342 = vpop.f32.mrb[0].mxu0
    %v343 = vadd.f32 0.0, %v342
    %v344 = vpop.f32.mrb[0].mxu0
    %v345 = vpop.f32.mrb[0].mxu0
    %346 = vdwg.mxu0
    %v347 = vadd.f32 %v229, %v300
    %v348 = vadd.f32 %v230, %v302
    %v349 = vadd.f32 %v231, %v341
    %v350 = vadd.f32 %v232, %v343
    %v351 = vxor.u32 %v347, 2147483648
    %v352 = vmul.f32 %v351, 1.442695
    %v353 = vpow.pop %v352
    %v354 = vadd.f32 %v353, 1.0
    %v355 = vrcp.pop %v354
    %v356 = vmul.f32 1.0, %v355
    %v357 = vxor.u32 %v348, 2147483648
    %v358 = vmul.f32 %v357, 1.442695
    %v359 = vpow.pop %v358
    %v360 = vadd.f32 %v359, 1.0
    %v361 = vrcp.pop %v360
    %v362 = vmul.f32 1.0, %v361
    %v363 = vtanh.pop %v349
    %v364 = vxor.u32 %v350, 2147483648
    %v365 = vmul.f32 %v364, 1.442695
    %v366 = vpow.pop %v365
    %v367 = vadd.f32 %v366, 1.0
    %v368 = vrcp.pop %v367
    %v369 = vmul.f32 1.0, %v368
    %v370 = vmul.f32 %v362, %v225
    %v371 = vmul.f32 %v356, %v363
    %v372 = vadd.f32 %v370, %v371
    %v373 = vtanh.pop %v372
    %v374 = vmul.f32 %v369, %v373
    %v375 = vpack.c.bf16 %v374, %v374
    %376 = vst [vmem:[#allocation3] sm:$0xff] %v372
    %377 = vst [vmem:[#allocation2] sm:$0xf] %v375
    %s378 = scalar_lea.vmem [#allocation9], 4
    %379 = vst [vmem:[%s378] sm:$0xf] %v375
    %v380 = vld [vmem:[#allocation2] sm:$0xf]
    %v381 = vld [vmem:[#allocation3] sm:$0xff]
    %s382 = scalar_lea.vmem [#allocation6], 32
    %v383 = vld [vmem:[%s382] sm:$0xff]
    %v384 = vld [vmem:[%s382 + $0x8] sm:$0xff]
    %v385 = vunpack.c.l.bf16 %v383
    %v386 = vunpack.c.h.bf16 %v383
    %v387 = vunpack.c.l.bf16 %v384
    %v388 = vunpack.c.h.bf16 %v384
    %v389 = vld [vmem:[#allocation4] sm:$0xff]
    %v390 = vld [vmem:[#allocation4 + $0x8] sm:$0xff]
    %v391 = vld [vmem:[#allocation4 + $0x10] sm:$0xff]
    %v392 = vld [vmem:[#allocation4 + $0x18] sm:$0xff]
    %v393 = vld [vmem:[#allocation4 + $0x20] sm:$0xff]
    %v394 = vld [vmem:[#allocation4 + $0x28] sm:$0xff]
    %v395 = vld [vmem:[#allocation4 + $0x30] sm:$0xff]
    %v396 = vld [vmem:[#allocation4 + $0x38] sm:$0xff]
    %v397 = vld [vmem:[#allocation4 + $0x40] sm:$0xff]
    %v398 = vld [vmem:[#allocation4 + $0x48] sm:$0xff]
    %v399 = vld [vmem:[#allocation4 + $0x50] sm:$0xff]
    %v400 = vld [vmem:[#allocation4 + $0x58] sm:$0xff]
    %v401 = vld [vmem:[#allocation4 + $0x60] sm:$0xff]
    %v402 = vld [vmem:[#allocation4 + $0x68] sm:$0xff]
    %v403 = vld [vmem:[#allocation4 + $0x70] sm:$0xff]
    %v404 = vld [vmem:[#allocation4 + $0x78] sm:$0xff]
    %v405 = vld [vmem:[#allocation4 + $0x80] sm:$0xff]
    %v406 = vld [vmem:[#allocation4 + $0x88] sm:$0xff]
    %v407 = vld [vmem:[#allocation4 + $0x90] sm:$0xff]
    %v408 = vld [vmem:[#allocation4 + $0x98] sm:$0xff]
    %v409 = vld [vmem:[#allocation4 + $0xa0] sm:$0xff]
    %v410 = vld [vmem:[#allocation4 + $0xa8] sm:$0xff]
    %v411 = vld [vmem:[#allocation4 + $0xb0] sm:$0xff]
    %v412 = vld [vmem:[#allocation4 + $0xb8] sm:$0xff]
    %v413 = vld [vmem:[#allocation4 + $0xc0] sm:$0xff]
    %v414 = vld [vmem:[#allocation4 + $0xc8] sm:$0xff]
    %v415 = vld [vmem:[#allocation4 + $0xd0] sm:$0xff]
    %v416 = vld [vmem:[#allocation4 + $0xd8] sm:$0xff]
    %v417 = vld [vmem:[#allocation4 + $0xe0] sm:$0xff]
    %v418 = vld [vmem:[#allocation4 + $0xe8] sm:$0xff]
    %v419 = vld [vmem:[#allocation4 + $0xf0] sm:$0xff]
    %v420 = vld [vmem:[#allocation4 + $0xf8] sm:$0xff]
    %421 = vmatprep.subr.bf16.mxu0 %v390
    %422 = vmatpush1.bf16.msra.mxu0 %v389
    %423 = vmatprep.subr.bf16.mxu0 %v394
    %424 = vmatpush1.bf16.msra.mxu0 %v393
    %425 = vmatprep.subr.bf16.mxu0 %v398
    %426 = vmatpush1.bf16.msra.mxu0 %v397
    %427 = vmatprep.subr.bf16.mxu0 %v402
    %428 = vmatpush1.bf16.msra.mxu0 %v401
    %429 = vmatprep.subr.bf16.mxu0 %v406
    %430 = vmatpush1.bf16.msra.mxu0 %v405
    %431 = vmatprep.subr.bf16.mxu0 %v410
    %432 = vmatpush1.bf16.msra.mxu0 %v409
    %433 = vmatprep.subr.bf16.mxu0 %v414
    %434 = vmatpush1.bf16.msra.mxu0 %v413
    %435 = vmatprep.subr.bf16.mxu0 %v418
    %436 = vmatpush1.bf16.msra.mxu0 %v417
    %437 = vmatprep.subr.bf16.mxu0 0
    %438 = vmatpush1.bf16.msra.mxu0 0
    %439 = vmatprep.subr.bf16.mxu0 0
    %440 = vmatpush1.bf16.msra.mxu0 0
    %441 = vmatprep.subr.bf16.mxu0 0
    %442 = vmatpush1.bf16.msra.mxu0 0
    %443 = vmatprep.subr.bf16.mxu0 0
    %444 = vmatpush1.bf16.msra.mxu0 0
    %445 = vmatprep.subr.bf16.mxu0 0
    %446 = vmatpush1.bf16.msra.mxu0 0
    %447 = vmatprep.subr.bf16.mxu0 0
    %448 = vmatpush1.bf16.msra.mxu0 0
    %449 = vmatprep.subr.bf16.mxu0 0
    %450 = vmatpush1.bf16.msra.mxu0 0
    %451 = vmatprep.subr.bf16.mxu0 0
    %452 = vmatpush1.bf16.msra.mxu0 0
    %453 = vmatprep.mubr.bf16.mxu0 0
    %454 = vmatmul.mubr.bf16.gmra.mrb[0].mxu0 %v380
    %v455 = vpop.f32.mrb[0].mxu0
    %v456 = vadd.f32 0.0, %v455
    %v457 = vpop.f32.mrb[0].mxu0
    %v458 = vadd.f32 0.0, %v457
    %v459 = vpop.f32.mrb[0].mxu0
    %v460 = vpop.f32.mrb[0].mxu0
    %461 = vdwg.mxu0
    %462 = vmatprep.subr.bf16.mxu0 %v392
    %463 = vmatpush1.bf16.msra.mxu0 %v391
    %464 = vmatprep.subr.bf16.mxu0 %v396
    %465 = vmatpush1.bf16.msra.mxu0 %v395
    %466 = vmatprep.subr.bf16.mxu0 %v400
    %467 = vmatpush1.bf16.msra.mxu0 %v399
    %468 = vmatprep.subr.bf16.mxu0 %v404
    %469 = vmatpush1.bf16.msra.mxu0 %v403
    %470 = vmatprep.subr.bf16.mxu0 %v408
    %471 = vmatpush1.bf16.msra.mxu0 %v407
    %472 = vmatprep.subr.bf16.mxu0 %v412
    %473 = vmatpush1.bf16.msra.mxu0 %v411
    %474 = vmatprep.subr.bf16.mxu0 %v416
    %475 = vmatpush1.bf16.msra.mxu0 %v415
    %476 = vmatprep.subr.bf16.mxu0 %v420
    %477 = vmatpush1.bf16.msra.mxu0 %v419
    %478 = vmatprep.subr.bf16.mxu0 0
    %479 = vmatpush1.bf16.msra.mxu0 0
    %480 = vmatprep.subr.bf16.mxu0 0
    %481 = vmatpush1.bf16.msra.mxu0 0
    %482 = vmatprep.subr.bf16.mxu0 0
    %483 = vmatpush1.bf16.msra.mxu0 0
    %484 = vmatprep.subr.bf16.mxu0 0
    %485 = vmatpush1.bf16.msra.mxu0 0
    %486 = vmatprep.subr.bf16.mxu0 0
    %487 = vmatpush1.bf16.msra.mxu0 0
    %488 = vmatprep.subr.bf16.mxu0 0
    %489 = vmatpush1.bf16.msra.mxu0 0
    %490 = vmatprep.subr.bf16.mxu0 0
    %491 = vmatpush1.bf16.msra.mxu0 0
    %492 = vmatprep.subr.bf16.mxu0 0
    %493 = vmatpush1.bf16.msra.mxu0 0
    %494 = vmatprep.mubr.bf16.mxu0 0
    %495 = vmatmul.mubr.bf16.gmra.mrb[0].mxu0 %v380
    %v496 = vpop.f32.mrb[0].mxu0
    %v497 = vadd.f32 0.0, %v496
    %v498 = vpop.f32.mrb[0].mxu0
    %v499 = vadd.f32 0.0, %v498
    %v500 = vpop.f32.mrb[0].mxu0
    %v501 = vpop.f32.mrb[0].mxu0
    %502 = vdwg.mxu0
    %v503 = vadd.f32 %v385, %v456
    %v504 = vadd.f32 %v386, %v458
    %v505 = vadd.f32 %v387, %v497
    %v506 = vadd.f32 %v388, %v499
    %v507 = vxor.u32 %v503, 2147483648
    %v508 = vmul.f32 %v507, 1.442695
    %v509 = vpow.pop %v508
    %v510 = vadd.f32 %v509, 1.0
    %v511 = vrcp.pop %v510
    %v512 = vmul.f32 1.0, %v511
    %v513 = vxor.u32 %v504, 2147483648
    %v514 = vmul.f32 %v513, 1.442695
    %v515 = vpow.pop %v514
    %v516 = vadd.f32 %v515, 1.0
    %v517 = vrcp.pop %v516
    %v518 = vmul.f32 1.0, %v517
    %v519 = vtanh.pop %v505
    %v520 = vxor.u32 %v506, 2147483648
    %v521 = vmul.f32 %v520, 1.442695
    %v522 = vpow.pop %v521
    %v523 = vadd.f32 %v522, 1.0
    %v524 = vrcp.pop %v523
    %v525 = vmul.f32 1.0, %v524
    %v526 = vmul.f32 %v518, %v381
    %v527 = vmul.f32 %v512, %v519
    %v528 = vadd.f32 %v526, %v527
    %v529 = vtanh.pop %v528
    %v530 = vmul.f32 %v525, %v529
    %v531 = vpack.c.bf16 %v530, %v530
    %532 = vst [vmem:[#allocation3] sm:$0xff] %v528
    %533 = vst [vmem:[#allocation2] sm:$0xf] %v531
    %s534 = scalar_lea.vmem [#allocation9], 8
    %535 = vst [vmem:[%s534] sm:$0xf] %v531
    %v536 = vld [vmem:[#allocation2] sm:$0xf]
    %v537 = vld [vmem:[#allocation3] sm:$0xff]
    %s538 = scalar_lea.vmem [#allocation6], 48
    %v539 = vld [vmem:[%s538] sm:$0xff]
    %v540 = vld [vmem:[%s538 + $0x8] sm:$0xff]
    %v541 = vunpack.c.l.bf16 %v539
    %v542 = vunpack.c.h.bf16 %v539
    %v543 = vunpack.c.l.bf16 %v540
    %v544 = vunpack.c.h.bf16 %v540
    %v545 = vld [vmem:[#allocation4] sm:$0xff]
    %v546 = vld [vmem:[#allocation4 + $0x8] sm:$0xff]
    %v547 = vld [vmem:[#allocation4 + $0x10] sm:$0xff]
    %v548 = vld [vmem:[#allocation4 + $0x18] sm:$0xff]
    %v549 = vld [vmem:[#allocation4 + $0x20] sm:$0xff]
    %v550 = vld [vmem:[#allocation4 + $0x28] sm:$0xff]
    %v551 = vld [vmem:[#allocation4 + $0x30] sm:$0xff]
    %v552 = vld [vmem:[#allocation4 + $0x38] sm:$0xff]
    %v553 = vld [vmem:[#allocation4 + $0x40] sm:$0xff]
    %v554 = vld [vmem:[#allocation4 + $0x48] sm:$0xff]
    %v555 = vld [vmem:[#allocation4 + $0x50] sm:$0xff]
    %v556 = vld [vmem:[#allocation4 + $0x58] sm:$0xff]
    %v557 = vld [vmem:[#allocation4 + $0x60] sm:$0xff]
    %v558 = vld [vmem:[#allocation4 + $0x68] sm:$0xff]
    %v559 = vld [vmem:[#allocation4 + $0x70] sm:$0xff]
    %v560 = vld [vmem:[#allocation4 + $0x78] sm:$0xff]
    %v561 = vld [vmem:[#allocation4 + $0x80] sm:$0xff]
    %v562 = vld [vmem:[#allocation4 + $0x88] sm:$0xff]
    %v563 = vld [vmem:[#allocation4 + $0x90] sm:$0xff]
    %v564 = vld [vmem:[#allocation4 + $0x98] sm:$0xff]
    %v565 = vld [vmem:[#allocation4 + $0xa0] sm:$0xff]
    %v566 = vld [vmem:[#allocation4 + $0xa8] sm:$0xff]
    %v567 = vld [vmem:[#allocation4 + $0xb0] sm:$0xff]
    %v568 = vld [vmem:[#allocation4 + $0xb8] sm:$0xff]
    %v569 = vld [vmem:[#allocation4 + $0xc0] sm:$0xff]
    %v570 = vld [vmem:[#allocation4 + $0xc8] sm:$0xff]
    %v571 = vld [vmem:[#allocation4 + $0xd0] sm:$0xff]
    %v572 = vld [vmem:[#allocation4 + $0xd8] sm:$0xff]
    %v573 = vld [vmem:[#allocation4 + $0xe0] sm:$0xff]
    %v574 = vld [vmem:[#allocation4 + $0xe8] sm:$0xff]
    %v575 = vld [vmem:[#allocation4 + $0xf0] sm:$0xff]
    %v576 = vld [vmem:[#allocation4 + $0xf8] sm:$0xff]
    %577 = vmatprep.subr.bf16.mxu0 %v546
    %578 = vmatpush1.bf16.msra.mxu0 %v545
    %579 = vmatprep.subr.bf16.mxu0 %v550
    %580 = vmatpush1.bf16.msra.mxu0 %v549
    %581 = vmatprep.subr.bf16.mxu0 %v554
    %582 = vmatpush1.bf16.msra.mxu0 %v553
    %583 = vmatprep.subr.bf16.mxu0 %v558
    %584 = vmatpush1.bf16.msra.mxu0 %v557
    %585 = vmatprep.subr.bf16.mxu0 %v562
    %586 = vmatpush1.bf16.msra.mxu0 %v561
    %587 = vmatprep.subr.bf16.mxu0 %v566
    %588 = vmatpush1.bf16.msra.mxu0 %v565
    %589 = vmatprep.subr.bf16.mxu0 %v570
    %590 = vmatpush1.bf16.msra.mxu0 %v569
    %591 = vmatprep.subr.bf16.mxu0 %v574
    %592 = vmatpush1.bf16.msra.mxu0 %v573
    %593 = vmatprep.subr.bf16.mxu0 0
    %594 = vmatpush1.bf16.msra.mxu0 0
    %595 = vmatprep.subr.bf16.mxu0 0
    %596 = vmatpush1.bf16.msra.mxu0 0
    %597 = vmatprep.subr.bf16.mxu0 0
    %598 = vmatpush1.bf16.msra.mxu0 0
    %599 = vmatprep.subr.bf16.mxu0 0
    %600 = vmatpush1.bf16.msra.mxu0 0
    %601 = vmatprep.subr.bf16.mxu0 0
    %602 = vmatpush1.bf16.msra.mxu0 0
    %603 = vmatprep.subr.bf16.mxu0 0
    %604 = vmatpush1.bf16.msra.mxu0 0
    %605 = vmatprep.subr.bf16.mxu0 0
    %606 = vmatpush1.bf16.msra.mxu0 0
    %607 = vmatprep.subr.bf16.mxu0 0
    %608 = vmatpush1.bf16.msra.mxu0 0
    %609 = vmatprep.mubr.bf16.mxu0 0
    %610 = vmatmul.mubr.bf16.gmra.mrb[0].mxu0 %v536
    %v611 = vpop.f32.mrb[0].mxu0
    %v612 = vadd.f32 0.0, %v611
    %v613 = vpop.f32.mrb[0].mxu0
    %v614 = vadd.f32 0.0, %v613
    %v615 = vpop.f32.mrb[0].mxu0
    %v616 = vpop.f32.mrb[0].mxu0
    %617 = vdwg.mxu0
    %618 = vmatprep.subr.bf16.mxu0 %v548
    %619 = vmatpush1.bf16.msra.mxu0 %v547
    %620 = vmatprep.subr.bf16.mxu0 %v552
    %621 = vmatpush1.bf16.msra.mxu0 %v551
    %622 = vmatprep.subr.bf16.mxu0 %v556
    %623 = vmatpush1.bf16.msra.mxu0 %v555
    %624 = vmatprep.subr.bf16.mxu0 %v560
    %625 = vmatpush1.bf16.msra.mxu0 %v559
    %626 = vmatprep.subr.bf16.mxu0 %v564
    %627 = vmatpush1.bf16.msra.mxu0 %v563
    %628 = vmatprep.subr.bf16.mxu0 %v568
    %629 = vmatpush1.bf16.msra.mxu0 %v567
    %630 = vmatprep.subr.bf16.mxu0 %v572
    %631 = vmatpush1.bf16.msra.mxu0 %v571
    %632 = vmatprep.subr.bf16.mxu0 %v576
    %633 = vmatpush1.bf16.msra.mxu0 %v575
    %634 = vmatprep.subr.bf16.mxu0 0
    %635 = vmatpush1.bf16.msra.mxu0 0
    %636 = vmatprep.subr.bf16.mxu0 0
    %637 = vmatpush1.bf16.msra.mxu0 0
    %638 = vmatprep.subr.bf16.mxu0 0
    %639 = vmatpush1.bf16.msra.mxu0 0
    %640 = vmatprep.subr.bf16.mxu0 0
    %641 = vmatpush1.bf16.msra.mxu0 0
    %642 = vmatprep.subr.bf16.mxu0 0
    %643 = vmatpush1.bf16.msra.mxu0 0
    %644 = vmatprep.subr.bf16.mxu0 0
    %645 = vmatpush1.bf16.msra.mxu0 0
    %646 = vmatprep.subr.bf16.mxu0 0
    %647 = vmatpush1.bf16.msra.mxu0 0
    %648 = vmatprep.subr.bf16.mxu0 0
    %649 = vmatpush1.bf16.msra.mxu0 0
    %650 = vmatprep.mubr.bf16.mxu0 0
    %651 = vmatmul.mubr.bf16.gmra.mrb[0].mxu0 %v536
    %v652 = vpop.f32.mrb[0].mxu0
    %v653 = vadd.f32 0.0, %v652
    %v654 = vpop.f32.mrb[0].mxu0
    %v655 = vadd.f32 0.0, %v654
    %v656 = vpop.f32.mrb[0].mxu0
    %v657 = vpop.f32.mrb[0].mxu0
    %658 = vdwg.mxu0
    %v659 = vadd.f32 %v541, %v612
    %v660 = vadd.f32 %v542, %v614
    %v661 = vadd.f32 %v543, %v653
    %v662 = vadd.f32 %v544, %v655
    %v663 = vxor.u32 %v659, 2147483648
    %v664 = vmul.f32 %v663, 1.442695
    %v665 = vpow.pop %v664
    %v666 = vadd.f32 %v665, 1.0
    %v667 = vrcp.pop %v666
    %v668 = vmul.f32 1.0, %v667
    %v669 = vxor.u32 %v660, 2147483648
    %v670 = vmul.f32 %v669, 1.442695
    %v671 = vpow.pop %v670
    %v672 = vadd.f32 %v671, 1.0
    %v673 = vrcp.pop %v672
    %v674 = vmul.f32 1.0, %v673
    %v675 = vtanh.pop %v661
    %v676 = vxor.u32 %v662, 2147483648
    %v677 = vmul.f32 %v676, 1.442695
    %v678 = vpow.pop %v677
    %v679 = vadd.f32 %v678, 1.0
    %v680 = vrcp.pop %v679
    %v681 = vmul.f32 1.0, %v680
    %v682 = vmul.f32 %v674, %v537
    %v683 = vmul.f32 %v668, %v675
    %v684 = vadd.f32 %v682, %v683
    %v685 = vtanh.pop %v684
    %v686 = vmul.f32 %v681, %v685
    %v687 = vpack.c.bf16 %v686, %v686
    %688 = vst [vmem:[#allocation3] sm:$0xff] %v684
    %689 = vst [vmem:[#allocation2] sm:$0xf] %v687
    %s690 = scalar_lea.vmem [#allocation9], 12
    %691 = vst [vmem:[%s690] sm:$0xf] %v687
    %v692 = vld [vmem:[#allocation2] sm:$0xf]
    %v693 = vld [vmem:[#allocation3] sm:$0xff]
    %s694 = scalar_lea.vmem [#allocation6], 64
    %v695 = vld [vmem:[%s694] sm:$0xff]
    %v696 = vld [vmem:[%s694 + $0x8] sm:$0xff]
    %v697 = vunpack.c.l.bf16 %v695
    %v698 = vunpack.c.h.bf16 %v695
    %v699 = vunpack.c.l.bf16 %v696
    %v700 = vunpack.c.h.bf16 %v696
    %v701 = vld [vmem:[#allocation4] sm:$0xff]
    %v702 = vld [vmem:[#allocation4 + $0x8] sm:$0xff]
    %v703 = vld [vmem:[#allocation4 + $0x10] sm:$0xff]
    %v704 = vld [vmem:[#allocation4 + $0x18] sm:$0xff]
    %v705 = vld [vmem:[#allocation4 + $0x20] sm:$0xff]
    %v706 = vld [vmem:[#allocation4 + $0x28] sm:$0xff]
    %v707 = vld [vmem:[#allocation4 + $0x30] sm:$0xff]
    %v708 = vld [vmem:[#allocation4 + $0x38] sm:$0xff]
    %v709 = vld [vmem:[#allocation4 + $0x40] sm:$0xff]
    %v710 = vld [vmem:[#allocation4 + $0x48] sm:$0xff]
    %v711 = vld [vmem:[#allocation4 + $0x50] sm:$0xff]
    %v712 = vld [vmem:[#allocation4 + $0x58] sm:$0xff]
    %v713 = vld [vmem:[#allocation4 + $0x60] sm:$0xff]
    %v714 = vld [vmem:[#allocation4 + $0x68] sm:$0xff]
    %v715 = vld [vmem:[#allocation4 + $0x70] sm:$0xff]
    %v716 = vld [vmem:[#allocation4 + $0x78] sm:$0xff]
    %v717 = vld [vmem:[#allocation4 + $0x80] sm:$0xff]
    %v718 = vld [vmem:[#allocation4 + $0x88] sm:$0xff]
    %v719 = vld [vmem:[#allocation4 + $0x90] sm:$0xff]
    %v720 = vld [vmem:[#allocation4 + $0x98] sm:$0xff]
    %v721 = vld [vmem:[#allocation4 + $0xa0] sm:$0xff]
    %v722 = vld [vmem:[#allocation4 + $0xa8] sm:$0xff]
    %v723 = vld [vmem:[#allocation4 + $0xb0] sm:$0xff]
    %v724 = vld [vmem:[#allocation4 + $0xb8] sm:$0xff]
    %v725 = vld [vmem:[#allocation4 + $0xc0] sm:$0xff]
    %v726 = vld [vmem:[#allocation4 + $0xc8] sm:$0xff]
    %v727 = vld [vmem:[#allocation4 + $0xd0] sm:$0xff]
    %v728 = vld [vmem:[#allocation4 + $0xd8] sm:$0xff]
    %v729 = vld [vmem:[#allocation4 + $0xe0] sm:$0xff]
    %v730 = vld [vmem:[#allocation4 + $0xe8] sm:$0xff]
    %v731 = vld [vmem:[#allocation4 + $0xf0] sm:$0xff]
    %v732 = vld [vmem:[#allocation4 + $0xf8] sm:$0xff]
    %733 = vmatprep.subr.bf16.mxu0 %v702
    %734 = vmatpush1.bf16.msra.mxu0 %v701
    %735 = vmatprep.subr.bf16.mxu0 %v706
    %736 = vmatpush1.bf16.msra.mxu0 %v705
    %737 = vmatprep.subr.bf16.mxu0 %v710
    %738 = vmatpush1.bf16.msra.mxu0 %v709
    %739 = vmatprep.subr.bf16.mxu0 %v714
    %740 = vmatpush1.bf16.msra.mxu0 %v713
    %741 = vmatprep.subr.bf16.mxu0 %v718
    %742 = vmatpush1.bf16.msra.mxu0 %v717
    %743 = vmatprep.subr.bf16.mxu0 %v722
    %744 = vmatpush1.bf16.msra.mxu0 %v721
    %745 = vmatprep.subr.bf16.mxu0 %v726
    %746 = vmatpush1.bf16.msra.mxu0 %v725
    %747 = vmatprep.subr.bf16.mxu0 %v730
    %748 = vmatpush1.bf16.msra.mxu0 %v729
    %749 = vmatprep.subr.bf16.mxu0 0
    %750 = vmatpush1.bf16.msra.mxu0 0
    %751 = vmatprep.subr.bf16.mxu0 0
    %752 = vmatpush1.bf16.msra.mxu0 0
    %753 = vmatprep.subr.bf16.mxu0 0
    %754 = vmatpush1.bf16.msra.mxu0 0
    %755 = vmatprep.subr.bf16.mxu0 0
    %756 = vmatpush1.bf16.msra.mxu0 0
    %757 = vmatprep.subr.bf16.mxu0 0
    %758 = vmatpush1.bf16.msra.mxu0 0
    %759 = vmatprep.subr.bf16.mxu0 0
    %760 = vmatpush1.bf16.msra.mxu0 0
    %761 = vmatprep.subr.bf16.mxu0 0
    %762 = vmatpush1.bf16.msra.mxu0 0
    %763 = vmatprep.subr.bf16.mxu0 0
    %764 = vmatpush1.bf16.msra.mxu0 0
    %765 = vmatprep.mubr.bf16.mxu0 0
    %766 = vmatmul.mubr.bf16.gmra.mrb[0].mxu0 %v692
    %v767 = vpop.f32.mrb[0].mxu0
    %v768 = vadd.f32 0.0, %v767
    %v769 = vpop.f32.mrb[0].mxu0
    %v770 = vadd.f32 0.0, %v769
    %v771 = vpop.f32.mrb[0].mxu0
    %v772 = vpop.f32.mrb[0].mxu0
    %773 = vdwg.mxu0
    %774 = vmatprep.subr.bf16.mxu0 %v704
    %775 = vmatpush1.bf16.msra.mxu0 %v703
    %776 = vmatprep.subr.bf16.mxu0 %v708
    %777 = vmatpush1.bf16.msra.mxu0 %v707
    %778 = vmatprep.subr.bf16.mxu0 %v712
    %779 = vmatpush1.bf16.msra.mxu0 %v711
    %780 = vmatprep.subr.bf16.mxu0 %v716
    %781 = vmatpush1.bf16.msra.mxu0 %v715
    %782 = vmatprep.subr.bf16.mxu0 %v720
    %783 = vmatpush1.bf16.msra.mxu0 %v719
    %784 = vmatprep.subr.bf16.mxu0 %v724
    %785 = vmatpush1.bf16.msra.mxu0 %v723
    %786 = vmatprep.subr.bf16.mxu0 %v728
    %787 = vmatpush1.bf16.msra.mxu0 %v727
    %788 = vmatprep.subr.bf16.mxu0 %v732
    %789 = vmatpush1.bf16.msra.mxu0 %v731
    %790 = vmatprep.subr.bf16.mxu0 0
    %791 = vmatpush1.bf16.msra.mxu0 0
    %792 = vmatprep.subr.bf16.mxu0 0
    %793 = vmatpush1.bf16.msra.mxu0 0
    %794 = vmatprep.subr.bf16.mxu0 0
    %795 = vmatpush1.bf16.msra.mxu0 0
    %796 = vmatprep.subr.bf16.mxu0 0
    %797 = vmatpush1.bf16.msra.mxu0 0
    %798 = vmatprep.subr.bf16.mxu0 0
    %799 = vmatpush1.bf16.msra.mxu0 0
    %800 = vmatprep.subr.bf16.mxu0 0
    %801 = vmatpush1.bf16.msra.mxu0 0
    %802 = vmatprep.subr.bf16.mxu0 0
    %803 = vmatpush1.bf16.msra.mxu0 0
    %804 = vmatprep.subr.bf16.mxu0 0
    %805 = vmatpush1.bf16.msra.mxu0 0
    %806 = vmatprep.mubr.bf16.mxu0 0
    %807 = vmatmul.mubr.bf16.gmra.mrb[0].mxu0 %v692
    %v808 = vpop.f32.mrb[0].mxu0
    %v809 = vadd.f32 0.0, %v808
    %v810 = vpop.f32.mrb[0].mxu0
    %v811 = vadd.f32 0.0, %v810
    %v812 = vpop.f32.mrb[0].mxu0
    %v813 = vpop.f32.mrb[0].mxu0
    %814 = vdwg.mxu0
    %v815 = vadd.f32 %v697, %v768
    %v816 = vadd.f32 %v698, %v770
    %v817 = vadd.f32 %v699, %v809
    %v818 = vadd.f32 %v700, %v811
    %v819 = vxor.u32 %v815, 2147483648
    %v820 = vmul.f32 %v819, 1.442695
    %v821 = vpow.pop %v820
    %v822 = vadd.f32 %v821, 1.0
    %v823 = vrcp.pop %v822
    %v824 = vmul.f32 1.0, %v823
    %v825 = vxor.u32 %v816, 2147483648
    %v826 = vmul.f32 %v825, 1.442695
    %v827 = vpow.pop %v826
    %v828 = vadd.f32 %v827, 1.0
    %v829 = vrcp.pop %v828
    %v830 = vmul.f32 1.0, %v829
    %v831 = vtanh.pop %v817
    %v832 = vxor.u32 %v818, 2147483648
    %v833 = vmul.f32 %v832, 1.442695
    %v834 = vpow.pop %v833
    %v835 = vadd.f32 %v834, 1.0
    %v836 = vrcp.pop %v835
    %v837 = vmul.f32 1.0, %v836
    %v838 = vmul.f32 %v830, %v693
    %v839 = vmul.f32 %v824, %v831
    %v840 = vadd.f32 %v838, %v839
    %v841 = vtanh.pop %v840
    %v842 = vmul.f32 %v837, %v841
    %v843 = vpack.c.bf16 %v842, %v842
    %844 = vst [vmem:[#allocation3] sm:$0xff] %v840
    %845 = vst [vmem:[#allocation2] sm:$0xf] %v843
    %s846 = scalar_lea.vmem [#allocation9], 16
    %847 = vst [vmem:[%s846] sm:$0xf] %v843
    %v848 = vld [vmem:[#allocation2] sm:$0xf]
    %v849 = vld [vmem:[#allocation3] sm:$0xff]
    %s850 = scalar_lea.vmem [#allocation6], 80
    %v851 = vld [vmem:[%s850] sm:$0xff]
    %v852 = vld [vmem:[%s850 + $0x8] sm:$0xff]
    %v853 = vunpack.c.l.bf16 %v851
    %v854 = vunpack.c.h.bf16 %v851
    %v855 = vunpack.c.l.bf16 %v852
    %v856 = vunpack.c.h.bf16 %v852
    %v857 = vld [vmem:[#allocation4] sm:$0xff]
    %v858 = vld [vmem:[#allocation4 + $0x8] sm:$0xff]
    %v859 = vld [vmem:[#allocation4 + $0x10] sm:$0xff]
    %v860 = vld [vmem:[#allocation4 + $0x18] sm:$0xff]
    %v861 = vld [vmem:[#allocation4 + $0x20] sm:$0xff]
    %v862 = vld [vmem:[#allocation4 + $0x28] sm:$0xff]
    %v863 = vld [vmem:[#allocation4 + $0x30] sm:$0xff]
    %v864 = vld [vmem:[#allocation4 + $0x38] sm:$0xff]
    %v865 = vld [vmem:[#allocation4 + $0x40] sm:$0xff]
    %v866 = vld [vmem:[#allocation4 + $0x48] sm:$0xff]
    %v867 = vld [vmem:[#allocation4 + $0x50] sm:$0xff]
    %v868 = vld [vmem:[#allocation4 + $0x58] sm:$0xff]
    %v869 = vld [vmem:[#allocation4 + $0x60] sm:$0xff]
    %v870 = vld [vmem:[#allocation4 + $0x68] sm:$0xff]
    %v871 = vld [vmem:[#allocation4 + $0x70] sm:$0xff]
    %v872 = vld [vmem:[#allocation4 + $0x78] sm:$0xff]
    %v873 = vld [vmem:[#allocation4 + $0x80] sm:$0xff]
    %v874 = vld [vmem:[#allocation4 + $0x88] sm:$0xff]
    %v875 = vld [vmem:[#allocation4 + $0x90] sm:$0xff]
    %v876 = vld [vmem:[#allocation4 + $0x98] sm:$0xff]
    %v877 = vld [vmem:[#allocation4 + $0xa0] sm:$0xff]
    %v878 = vld [vmem:[#allocation4 + $0xa8] sm:$0xff]
    %v879 = vld [vmem:[#allocation4 + $0xb0] sm:$0xff]
    %v880 = vld [vmem:[#allocation4 + $0xb8] sm:$0xff]
    %v881 = vld [vmem:[#allocation4 + $0xc0] sm:$0xff]
    %v882 = vld [vmem:[#allocation4 + $0xc8] sm:$0xff]
    %v883 = vld [vmem:[#allocation4 + $0xd0] sm:$0xff]
    %v884 = vld [vmem:[#allocation4 + $0xd8] sm:$0xff]
    %v885 = vld [vmem:[#allocation4 + $0xe0] sm:$0xff]
    %v886 = vld [vmem:[#allocation4 + $0xe8] sm:$0xff]
    %v887 = vld [vmem:[#allocation4 + $0xf0] sm:$0xff]
    %v888 = vld [vmem:[#allocation4 + $0xf8] sm:$0xff]
    %889 = vmatprep.subr.bf16.mxu0 %v858
    %890 = vmatpush1.bf16.msra.mxu0 %v857
    %891 = vmatprep.subr.bf16.mxu0 %v862
    %892 = vmatpush1.bf16.msra.mxu0 %v861
    %893 = vmatprep.subr.bf16.mxu0 %v866
    %894 = vmatpush1.bf16.msra.mxu0 %v865
    %895 = vmatprep.subr.bf16.mxu0 %v870
    %896 = vmatpush1.bf16.msra.mxu0 %v869
    %897 = vmatprep.subr.bf16.mxu0 %v874
    %898 = vmatpush1.bf16.msra.mxu0 %v873
    %899 = vmatprep.subr.bf16.mxu0 %v878
    %900 = vmatpush1.bf16.msra.mxu0 %v877
    %901 = vmatprep.subr.bf16.mxu0 %v882
    %902 = vmatpush1.bf16.msra.mxu0 %v881
    %903 = vmatprep.subr.bf16.mxu0 %v886
    %904 = vmatpush1.bf16.msra.mxu0 %v885
    %905 = vmatprep.subr.bf16.mxu0 0
    %906 = vmatpush1.bf16.msra.mxu0 0
    %907 = vmatprep.subr.bf16.mxu0 0
    %908 = vmatpush1.bf16.msra.mxu0 0
    %909 = vmatprep.subr.bf16.mxu0 0
    %910 = vmatpush1.bf16.msra.mxu0 0
    %911 = vmatprep.subr.bf16.mxu0 0
    %912 = vmatpush1.bf16.msra.mxu0 0
    %913 = vmatprep.subr.bf16.mxu0 0
    %914 = vmatpush1.bf16.msra.mxu0 0
    %915 = vmatprep.subr.bf16.mxu0 0
    %916 = vmatpush1.bf16.msra.mxu0 0
    %917 = vmatprep.subr.bf16.mxu0 0
    %918 = vmatpush1.bf16.msra.mxu0 0
    %919 = vmatprep.subr.bf16.mxu0 0
    %920 = vmatpush1.bf16.msra.mxu0 0
    %921 = vmatprep.mubr.bf16.mxu0 0
    %922 = vmatmul.mubr.bf16.gmra.mrb[0].mxu0 %v848
    %v923 = vpop.f32.mrb[0].mxu0
    %v924 = vadd.f32 0.0, %v923
    %v925 = vpop.f32.mrb[0].mxu0
    %v926 = vadd.f32 0.0, %v925
    %v927 = vpop.f32.mrb[0].mxu0
    %v928 = vpop.f32.mrb[0].mxu0
    %929 = vdwg.mxu0
    %930 = vmatprep.subr.bf16.mxu0 %v860
    %931 = vmatpush1.bf16.msra.mxu0 %v859
    %932 = vmatprep.subr.bf16.mxu0 %v864
    %933 = vmatpush1.bf16.msra.mxu0 %v863
    %934 = vmatprep.subr.bf16.mxu0 %v868
    %935 = vmatpush1.bf16.msra.mxu0 %v867
    %936 = vmatprep.subr.bf16.mxu0 %v872
    %937 = vmatpush1.bf16.msra.mxu0 %v871
    %938 = vmatprep.subr.bf16.mxu0 %v876
    %939 = vmatpush1.bf16.msra.mxu0 %v875
    %940 = vmatprep.subr.bf16.mxu0 %v880
    %941 = vmatpush1.bf16.msra.mxu0 %v879
    %942 = vmatprep.subr.bf16.mxu0 %v884
    %943 = vmatpush1.bf16.msra.mxu0 %v883
    %944 = vmatprep.subr.bf16.mxu0 %v888
    %945 = vmatpush1.bf16.msra.mxu0 %v887
    %946 = vmatprep.subr.bf16.mxu0 0
    %947 = vmatpush1.bf16.msra.mxu0 0
    %948 = vmatprep.subr.bf16.mxu0 0
    %949 = vmatpush1.bf16.msra.mxu0 0
    %950 = vmatprep.subr.bf16.mxu0 0
    %951 = vmatpush1.bf16.msra.mxu0 0
    %952 = vmatprep.subr.bf16.mxu0 0
    %953 = vmatpush1.bf16.msra.mxu0 0
    %954 = vmatprep.subr.bf16.mxu0 0
    %955 = vmatpush1.bf16.msra.mxu0 0
    %956 = vmatprep.subr.bf16.mxu0 0
    %957 = vmatpush1.bf16.msra.mxu0 0
    %958 = vmatprep.subr.bf16.mxu0 0
    %959 = vmatpush1.bf16.msra.mxu0 0
    %960 = vmatprep.subr.bf16.mxu0 0
    %961 = vmatpush1.bf16.msra.mxu0 0
    %962 = vmatprep.mubr.bf16.mxu0 0
    %963 = vmatmul.mubr.bf16.gmra.mrb[0].mxu0 %v848
    %v964 = vpop.f32.mrb[0].mxu0
    %v965 = vadd.f32 0.0, %v964
    %v966 = vpop.f32.mrb[0].mxu0
    %v967 = vadd.f32 0.0, %v966
    %v968 = vpop.f32.mrb[0].mxu0
    %v969 = vpop.f32.mrb[0].mxu0
    %970 = vdwg.mxu0
    %v971 = vadd.f32 %v853, %v924
    %v972 = vadd.f32 %v854, %v926
    %v973 = vadd.f32 %v855, %v965
    %v974 = vadd.f32 %v856, %v967
    %v975 = vxor.u32 %v971, 2147483648
    %v976 = vmul.f32 %v975, 1.442695
    %v977 = vpow.pop %v976
    %v978 = vadd.f32 %v977, 1.0
    %v979 = vrcp.pop %v978
    %v980 = vmul.f32 1.0, %v979
    %v981 = vxor.u32 %v972, 2147483648
    %v982 = vmul.f32 %v981, 1.442695
    %v983 = vpow.pop %v982
    %v984 = vadd.f32 %v983, 1.0
    %v985 = vrcp.pop %v984
    %v986 = vmul.f32 1.0, %v985
    %v987 = vtanh.pop %v973
    %v988 = vxor.u32 %v974, 2147483648
    %v989 = vmul.f32 %v988, 1.442695
    %v990 = vpow.pop %v989
    %v991 = vadd.f32 %v990, 1.0
    %v992 = vrcp.pop %v991
    %v993 = vmul.f32 1.0, %v992
    %v994 = vmul.f32 %v986, %v849
    %v995 = vmul.f32 %v980, %v987
    %v996 = vadd.f32 %v994, %v995
    %v997 = vtanh.pop %v996
    %v998 = vmul.f32 %v993, %v997
    %v999 = vpack.c.bf16 %v998, %v998
    %1000 = vst [vmem:[#allocation3] sm:$0xff] %v996
    %1001 = vst [vmem:[#allocation2] sm:$0xf] %v999
    %s1002 = scalar_lea.vmem [#allocation9], 20
    %1003 = vst [vmem:[%s1002] sm:$0xf] %v999
    %v1004 = vld [vmem:[#allocation2] sm:$0xf]
    %v1005 = vld [vmem:[#allocation3] sm:$0xff]
    %s1006 = scalar_lea.vmem [#allocation6], 96
    %v1007 = vld [vmem:[%s1006] sm:$0xff]
    %v1008 = vld [vmem:[%s1006 + $0x8] sm:$0xff]
    %v1009 = vunpack.c.l.bf16 %v1007
    %v1010 = vunpack.c.h.bf16 %v1007
    %v1011 = vunpack.c.l.bf16 %v1008
    %v1012 = vunpack.c.h.bf16 %v1008
    %v1013 = vld [vmem:[#allocation4] sm:$0xff]
    %v1014 = vld [vmem:[#allocation4 + $0x8] sm:$0xff]
    %v1015 = vld [vmem:[#allocation4 + $0x10] sm:$0xff]
    %v1016 = vld [vmem:[#allocation4 + $0x18] sm:$0xff]
    %v1017 = vld [vmem:[#allocation4 + $0x20] sm:$0xff]
    %v1018 = vld [vmem:[#allocation4 + $0x28] sm:$0xff]
    %v1019 = vld [vmem:[#allocation4 + $0x30] sm:$0xff]
    %v1020 = vld [vmem:[#allocation4 + $0x38] sm:$0xff]
    %v1021 = vld [vmem:[#allocation4 + $0x40] sm:$0xff]
    %v1022 = vld [vmem:[#allocation4 + $0x48] sm:$0xff]
    %v1023 = vld [vmem:[#allocation4 + $0x50] sm:$0xff]
    %v1024 = vld [vmem:[#allocation4 + $0x58] sm:$0xff]
    %v1025 = vld [vmem:[#allocation4 + $0x60] sm:$0xff]
    %v1026 = vld [vmem:[#allocation4 + $0x68] sm:$0xff]
    %v1027 = vld [vmem:[#allocation4 + $0x70] sm:$0xff]
    %v1028 = vld [vmem:[#allocation4 + $0x78] sm:$0xff]
    %v1029 = vld [vmem:[#allocation4 + $0x80] sm:$0xff]
    %v1030 = vld [vmem:[#allocation4 + $0x88] sm:$0xff]
    %v1031 = vld [vmem:[#allocation4 + $0x90] sm:$0xff]
    %v1032 = vld [vmem:[#allocation4 + $0x98] sm:$0xff]
    %v1033 = vld [vmem:[#allocation4 + $0xa0] sm:$0xff]
    %v1034 = vld [vmem:[#allocation4 + $0xa8] sm:$0xff]
    %v1035 = vld [vmem:[#allocation4 + $0xb0] sm:$0xff]
    %v1036 = vld [vmem:[#allocation4 + $0xb8] sm:$0xff]
    %v1037 = vld [vmem:[#allocation4 + $0xc0] sm:$0xff]
    %v1038 = vld [vmem:[#allocation4 + $0xc8] sm:$0xff]
    %v1039 = vld [vmem:[#allocation4 + $0xd0] sm:$0xff]
    %v1040 = vld [vmem:[#allocation4 + $0xd8] sm:$0xff]
    %v1041 = vld [vmem:[#allocation4 + $0xe0] sm:$0xff]
    %v1042 = vld [vmem:[#allocation4 + $0xe8] sm:$0xff]
    %v1043 = vld [vmem:[#allocation4 + $0xf0] sm:$0xff]
    %v1044 = vld [vmem:[#allocation4 + $0xf8] sm:$0xff]
    %1045 = vmatprep.subr.bf16.mxu0 %v1014
    %1046 = vmatpush1.bf16.msra.mxu0 %v1013
    %1047 = vmatprep.subr.bf16.mxu0 %v1018
    %1048 = vmatpush1.bf16.msra.mxu0 %v1017
    %1049 = vmatprep.subr.bf16.mxu0 %v1022
    %1050 = vmatpush1.bf16.msra.mxu0 %v1021
    %1051 = vmatprep.subr.bf16.mxu0 %v1026
    %1052 = vmatpush1.bf16.msra.mxu0 %v1025
    %1053 = vmatprep.subr.bf16.mxu0 %v1030
    %1054 = vmatpush1.bf16.msra.mxu0 %v1029
    %1055 = vmatprep.subr.bf16.mxu0 %v1034
    %1056 = vmatpush1.bf16.msra.mxu0 %v1033
    %1057 = vmatprep.subr.bf16.mxu0 %v1038
    %1058 = vmatpush1.bf16.msra.mxu0 %v1037
    %1059 = vmatprep.subr.bf16.mxu0 %v1042
    %1060 = vmatpush1.bf16.msra.mxu0 %v1041
    %1061 = vmatprep.subr.bf16.mxu0 0
    %1062 = vmatpush1.bf16.msra.mxu0 0
    %1063 = vmatprep.subr.bf16.mxu0 0
    %1064 = vmatpush1.bf16.msra.mxu0 0
    %1065 = vmatprep.subr.bf16.mxu0 0
    %1066 = vmatpush1.bf16.msra.mxu0 0
    %1067 = vmatprep.subr.bf16.mxu0 0
    %1068 = vmatpush1.bf16.msra.mxu0 0
    %1069 = vmatprep.subr.bf16.mxu0 0
    %1070 = vmatpush1.bf16.msra.mxu0 0
    %1071 = vmatprep.subr.bf16.mxu0 0
    %1072 = vmatpush1.bf16.msra.mxu0 0
    %1073 = vmatprep.subr.bf16.mxu0 0
    %1074 = vmatpush1.bf16.msra.mxu0 0
    %1075 = vmatprep.subr.bf16.mxu0 0
    %1076 = vmatpush1.bf16.msra.mxu0 0
    %1077 = vmatprep.mubr.bf16.mxu0 0
    %1078 = vmatmul.mubr.bf16.gmra.mrb[0].mxu0 %v1004
    %v1079 = vpop.f32.mrb[0].mxu0
    %v1080 = vadd.f32 0.0, %v1079
    %v1081 = vpop.f32.mrb[0].mxu0
    %v1082 = vadd.f32 0.0, %v1081
    %v1083 = vpop.f32.mrb[0].mxu0
    %v1084 = vpop.f32.mrb[0].mxu0
    %1085 = vdwg.mxu0
    %1086 = vmatprep.subr.bf16.mxu0 %v1016
    %1087 = vmatpush1.bf16.msra.mxu0 %v1015
    %1088 = vmatprep.subr.bf16.mxu0 %v1020
    %1089 = vmatpush1.bf16.msra.mxu0 %v1019
    %1090 = vmatprep.subr.bf16.mxu0 %v1024
    %1091 = vmatpush1.bf16.msra.mxu0 %v1023
    %1092 = vmatprep.subr.bf16.mxu0 %v1028
    %1093 = vmatpush1.bf16.msra.mxu0 %v1027
    %1094 = vmatprep.subr.bf16.mxu0 %v1032
    %1095 = vmatpush1.bf16.msra.mxu0 %v1031
    %1096 = vmatprep.subr.bf16.mxu0 %v1036
    %1097 = vmatpush1.bf16.msra.mxu0 %v1035
    %1098 = vmatprep.subr.bf16.mxu0 %v1040
    %1099 = vmatpush1.bf16.msra.mxu0 %v1039
    %1100 = vmatprep.subr.bf16.mxu0 %v1044
    %1101 = vmatpush1.bf16.msra.mxu0 %v1043
    %1102 = vmatprep.subr.bf16.mxu0 0
    %1103 = vmatpush1.bf16.msra.mxu0 0
    %1104 = vmatprep.subr.bf16.mxu0 0
    %1105 = vmatpush1.bf16.msra.mxu0 0
    %1106 = vmatprep.subr.bf16.mxu0 0
    %1107 = vmatpush1.bf16.msra.mxu0 0
    %1108 = vmatprep.subr.bf16.mxu0 0
    %1109 = vmatpush1.bf16.msra.mxu0 0
    %1110 = vmatprep.subr.bf16.mxu0 0
    %1111 = vmatpush1.bf16.msra.mxu0 0
    %1112 = vmatprep.subr.bf16.mxu0 0
    %1113 = vmatpush1.bf16.msra.mxu0 0
    %1114 = vmatprep.subr.bf16.mxu0 0
    %1115 = vmatpush1.bf16.msra.mxu0 0
    %1116 = vmatprep.subr.bf16.mxu0 0
    %1117 = vmatpush1.bf16.msra.mxu0 0
    %1118 = vmatprep.mubr.bf16.mxu0 0
    %1119 = vmatmul.mubr.bf16.gmra.mrb[0].mxu0 %v1004
    %v1120 = vpop.f32.mrb[0].mxu0
    %v1121 = vadd.f32 0.0, %v1120
    %v1122 = vpop.f32.mrb[0].mxu0
    %v1123 = vadd.f32 0.0, %v1122
    %v1124 = vpop.f32.mrb[0].mxu0
    %v1125 = vpop.f32.mrb[0].mxu0
    %1126 = vdwg.mxu0
    %v1127 = vadd.f32 %v1009, %v1080
    %v1128 = vadd.f32 %v1010, %v1082
    %v1129 = vadd.f32 %v1011, %v1121
    %v1130 = vadd.f32 %v1012, %v1123
    %v1131 = vxor.u32 %v1127, 2147483648
    %v1132 = vmul.f32 %v1131, 1.442695
    %v1133 = vpow.pop %v1132
    %v1134 = vadd.f32 %v1133, 1.0
    %v1135 = vrcp.pop %v1134
    %v1136 = vmul.f32 1.0, %v1135
    %v1137 = vxor.u32 %v1128, 2147483648
    %v1138 = vmul.f32 %v1137, 1.442695
    %v1139 = vpow.pop %v1138
    %v1140 = vadd.f32 %v1139, 1.0
    %v1141 = vrcp.pop %v1140
    %v1142 = vmul.f32 1.0, %v1141
    %v1143 = vtanh.pop %v1129
    %v1144 = vxor.u32 %v1130, 2147483648
    %v1145 = vmul.f32 %v1144, 1.442695
    %v1146 = vpow.pop %v1145
    %v1147 = vadd.f32 %v1146, 1.0
    %v1148 = vrcp.pop %v1147
    %v1149 = vmul.f32 1.0, %v1148
    %v1150 = vmul.f32 %v1142, %v1005
    %v1151 = vmul.f32 %v1136, %v1143
    %v1152 = vadd.f32 %v1150, %v1151
    %v1153 = vtanh.pop %v1152
    %v1154 = vmul.f32 %v1149, %v1153
    %v1155 = vpack.c.bf16 %v1154, %v1154
    %1156 = vst [vmem:[#allocation3] sm:$0xff] %v1152
    %1157 = vst [vmem:[#allocation2] sm:$0xf] %v1155
    %s1158 = scalar_lea.vmem [#allocation9], 24
    %1159 = vst [vmem:[%s1158] sm:$0xf] %v1155
    %v1160 = vld [vmem:[#allocation2] sm:$0xf]
    %v1161 = vld [vmem:[#allocation3] sm:$0xff]
    %s1162 = scalar_lea.vmem [#allocation6], 112
    %v1163 = vld [vmem:[%s1162] sm:$0xff]
    %v1164 = vld [vmem:[%s1162 + $0x8] sm:$0xff]
    %v1165 = vunpack.c.l.bf16 %v1163
    %v1166 = vunpack.c.h.bf16 %v1163
    %v1167 = vunpack.c.l.bf16 %v1164
    %v1168 = vunpack.c.h.bf16 %v1164
    %v1169 = vld [vmem:[#allocation4] sm:$0xff]
    %v1170 = vld [vmem:[#allocation4 + $0x8] sm:$0xff]
    %v1171 = vld [vmem:[#allocation4 + $0x10] sm:$0xff]
    %v1172 = vld [vmem:[#allocation4 + $0x18] sm:$0xff]
    %v1173 = vld [vmem:[#allocation4 + $0x20] sm:$0xff]
    %v1174 = vld [vmem:[#allocation4 + $0x28] sm:$0xff]
    %v1175 = vld [vmem:[#allocation4 + $0x30] sm:$0xff]
    %v1176 = vld [vmem:[#allocation4 + $0x38] sm:$0xff]
    %v1177 = vld [vmem:[#allocation4 + $0x40] sm:$0xff]
    %v1178 = vld [vmem:[#allocation4 + $0x48] sm:$0xff]
    %v1179 = vld [vmem:[#allocation4 + $0x50] sm:$0xff]
    %v1180 = vld [vmem:[#allocation4 + $0x58] sm:$0xff]
    %v1181 = vld [vmem:[#allocation4 + $0x60] sm:$0xff]
    %v1182 = vld [vmem:[#allocation4 + $0x68] sm:$0xff]
    %v1183 = vld [vmem:[#allocation4 + $0x70] sm:$0xff]
    %v1184 = vld [vmem:[#allocation4 + $0x78] sm:$0xff]
    %v1185 = vld [vmem:[#allocation4 + $0x80] sm:$0xff]
    %v1186 = vld [vmem:[#allocation4 + $0x88] sm:$0xff]
    %v1187 = vld [vmem:[#allocation4 + $0x90] sm:$0xff]
    %v1188 = vld [vmem:[#allocation4 + $0x98] sm:$0xff]
    %v1189 = vld [vmem:[#allocation4 + $0xa0] sm:$0xff]
    %v1190 = vld [vmem:[#allocation4 + $0xa8] sm:$0xff]
    %v1191 = vld [vmem:[#allocation4 + $0xb0] sm:$0xff]
    %v1192 = vld [vmem:[#allocation4 + $0xb8] sm:$0xff]
    %v1193 = vld [vmem:[#allocation4 + $0xc0] sm:$0xff]
    %v1194 = vld [vmem:[#allocation4 + $0xc8] sm:$0xff]
    %v1195 = vld [vmem:[#allocation4 + $0xd0] sm:$0xff]
    %v1196 = vld [vmem:[#allocation4 + $0xd8] sm:$0xff]
    %v1197 = vld [vmem:[#allocation4 + $0xe0] sm:$0xff]
    %v1198 = vld [vmem:[#allocation4 + $0xe8] sm:$0xff]
    %v1199 = vld [vmem:[#allocation4 + $0xf0] sm:$0xff]
    %v1200 = vld [vmem:[#allocation4 + $0xf8] sm:$0xff]
    %1201 = vmatprep.subr.bf16.mxu0 %v1170
    %1202 = vmatpush1.bf16.msra.mxu0 %v1169
    %1203 = vmatprep.subr.bf16.mxu0 %v1174
    %1204 = vmatpush1.bf16.msra.mxu0 %v1173
    %1205 = vmatprep.subr.bf16.mxu0 %v1178
    %1206 = vmatpush1.bf16.msra.mxu0 %v1177
    %1207 = vmatprep.subr.bf16.mxu0 %v1182
    %1208 = vmatpush1.bf16.msra.mxu0 %v1181
    %1209 = vmatprep.subr.bf16.mxu0 %v1186
    %1210 = vmatpush1.bf16.msra.mxu0 %v1185
    %1211 = vmatprep.subr.bf16.mxu0 %v1190
    %1212 = vmatpush1.bf16.msra.mxu0 %v1189
    %1213 = vmatprep.subr.bf16.mxu0 %v1194
    %1214 = vmatpush1.bf16.msra.mxu0 %v1193
    %1215 = vmatprep.subr.bf16.mxu0 %v1198
    %1216 = vmatpush1.bf16.msra.mxu0 %v1197
    %1217 = vmatprep.subr.bf16.mxu0 0
    %1218 = vmatpush1.bf16.msra.mxu0 0
    %1219 = vmatprep.subr.bf16.mxu0 0
    %1220 = vmatpush1.bf16.msra.mxu0 0
    %1221 = vmatprep.subr.bf16.mxu0 0
    %1222 = vmatpush1.bf16.msra.mxu0 0
    %1223 = vmatprep.subr.bf16.mxu0 0
    %1224 = vmatpush1.bf16.msra.mxu0 0
    %1225 = vmatprep.subr.bf16.mxu0 0
    %1226 = vmatpush1.bf16.msra.mxu0 0
    %1227 = vmatprep.subr.bf16.mxu0 0
    %1228 = vmatpush1.bf16.msra.mxu0 0
    %1229 = vmatprep.subr.bf16.mxu0 0
    %1230 = vmatpush1.bf16.msra.mxu0 0
    %1231 = vmatprep.subr.bf16.mxu0 0
    %1232 = vmatpush1.bf16.msra.mxu0 0
    %1233 = vmatprep.mubr.bf16.mxu0 0
    %1234 = vmatmul.mubr.bf16.gmra.mrb[0].mxu0 %v1160
    %v1235 = vpop.f32.mrb[0].mxu0
    %v1236 = vadd.f32 0.0, %v1235
    %v1237 = vpop.f32.mrb[0].mxu0
    %v1238 = vadd.f32 0.0, %v1237
    %v1239 = vpop.f32.mrb[0].mxu0
    %v1240 = vpop.f32.mrb[0].mxu0
    %1241 = vdwg.mxu0
    %1242 = vmatprep.subr.bf16.mxu0 %v1172
    %1243 = vmatpush1.bf16.msra.mxu0 %v1171
    %1244 = vmatprep.subr.bf16.mxu0 %v1176
    %1245 = vmatpush1.bf16.msra.mxu0 %v1175
    %1246 = vmatprep.subr.bf16.mxu0 %v1180
    %1247 = vmatpush1.bf16.msra.mxu0 %v1179
    %1248 = vmatprep.subr.bf16.mxu0 %v1184
    %1249 = vmatpush1.bf16.msra.mxu0 %v1183
    %1250 = vmatprep.subr.bf16.mxu0 %v1188
    %1251 = vmatpush1.bf16.msra.mxu0 %v1187
    %1252 = vmatprep.subr.bf16.mxu0 %v1192
    %1253 = vmatpush1.bf16.msra.mxu0 %v1191
    %1254 = vmatprep.subr.bf16.mxu0 %v1196
    %1255 = vmatpush1.bf16.msra.mxu0 %v1195
    %1256 = vmatprep.subr.bf16.mxu0 %v1200
    %1257 = vmatpush1.bf16.msra.mxu0 %v1199
    %1258 = vmatprep.subr.bf16.mxu0 0
    %1259 = vmatpush1.bf16.msra.mxu0 0
    %1260 = vmatprep.subr.bf16.mxu0 0
    %1261 = vmatpush1.bf16.msra.mxu0 0
    %1262 = vmatprep.subr.bf16.mxu0 0
    %1263 = vmatpush1.bf16.msra.mxu0 0
    %1264 = vmatprep.subr.bf16.mxu0 0
    %1265 = vmatpush1.bf16.msra.mxu0 0
    %1266 = vmatprep.subr.bf16.mxu0 0
    %1267 = vmatpush1.bf16.msra.mxu0 0
    %1268 = vmatprep.subr.bf16.mxu0 0
    %1269 = vmatpush1.bf16.msra.mxu0 0
    %1270 = vmatprep.subr.bf16.mxu0 0
    %1271 = vmatpush1.bf16.msra.mxu0 0
    %1272 = vmatprep.subr.bf16.mxu0 0
    %1273 = vmatpush1.bf16.msra.mxu0 0
    %1274 = vmatprep.mubr.bf16.mxu0 0
    %1275 = vmatmul.mubr.bf16.gmra.mrb[0].mxu0 %v1160
    %v1276 = vpop.f32.mrb[0].mxu0
    %v1277 = vadd.f32 0.0, %v1276
    %v1278 = vpop.f32.mrb[0].mxu0
    %v1279 = vadd.f32 0.0, %v1278
    %v1280 = vpop.f32.mrb[0].mxu0
    %v1281 = vpop.f32.mrb[0].mxu0
    %1282 = vdwg.mxu0
    %v1283 = vadd.f32 %v1165, %v1236
    %v1284 = vadd.f32 %v1166, %v1238
    %v1285 = vadd.f32 %v1167, %v1277
    %v1286 = vadd.f32 %v1168, %v1279
    %v1287 = vxor.u32 %v1283, 2147483648
    %v1288 = vmul.f32 %v1287, 1.442695
    %v1289 = vpow.pop %v1288
    %v1290 = vadd.f32 %v1289, 1.0
    %v1291 = vrcp.pop %v1290
    %v1292 = vmul.f32 1.0, %v1291
    %v1293 = vxor.u32 %v1284, 2147483648
    %v1294 = vmul.f32 %v1293, 1.442695
    %v1295 = vpow.pop %v1294
    %v1296 = vadd.f32 %v1295, 1.0
    %v1297 = vrcp.pop %v1296
    %v1298 = vmul.f32 1.0, %v1297
    %v1299 = vtanh.pop %v1285
    %v1300 = vxor.u32 %v1286, 2147483648
    %v1301 = vmul.f32 %v1300, 1.442695
    %v1302 = vpow.pop %v1301
    %v1303 = vadd.f32 %v1302, 1.0
    %v1304 = vrcp.pop %v1303
    %v1305 = vmul.f32 1.0, %v1304
    %v1306 = vmul.f32 %v1298, %v1161
    %v1307 = vmul.f32 %v1292, %v1299
    %v1308 = vadd.f32 %v1306, %v1307
    %v1309 = vtanh.pop %v1308
    %v1310 = vmul.f32 %v1305, %v1309
    %v1311 = vpack.c.bf16 %v1310, %v1310
    %1312 = vst [vmem:[#allocation3] sm:$0xff] %v1308
    %1313 = vst [vmem:[#allocation2] sm:$0xf] %v1311
    %s1314 = scalar_lea.vmem [#allocation9], 28
    %1315 = vst [vmem:[%s1314] sm:$0xf] %v1311
    // Predicated region
    $region14: #{tpu_custom_call.1} parent=1 // pred_check
      _
    $region15: #{tpu_custom_call.1} parent=1 // pred_check_branch
      %1317 = sbr.rel (0) target = $region17
    $region16: #{tpu_custom_call.1} parent=1 // pred_region
      %s1319 = ssub.s32 512, 512
      %1320 = vsyncadd [#allocation8], %s1319
      %s1321 = sshll.u32 [#allocation9], 4
      %s1322 = int_to_ptr.vmem [resolvable:$true] %s1321
      %1327 = dma.vmem_to_hbm [thread:$0]  %s1322, 512, %s2, [#allocation8], 64, 64, 4
    $region17: #{tpu_custom_call.1} parent=1 // pred_fallthru
      _
    // Predicated region
    $region18: #{tpu_custom_call.1} parent=1 // pred_check
      _
    $region19: #{tpu_custom_call.1} parent=1 // pred_check_branch
      %1329 = sbr.rel (0) target = $region21
    $region20: #{tpu_custom_call.1} parent=1 // pred_region
      %1330 = dma.done [#allocation8], 512
    $region21: #{tpu_custom_call.1} parent=1 // pred_fallthru
      _
    %1331 = vsyncpa [#allocation7], 1
    %1332 = vsyncpa [#allocation8], 1
  %1333 = vsyncmov [#allocation5]
  %s1334 = vpop.sfrf %1333
  %p1335 = scmp.eq.s32.totalorder %s1334, 0
  %p1336 = pneg %p1335
  %1338 = shalt.err (%p1336)

</llo_original>
